<compile_context>
chip_gen: v7x
topology: tpu7x:2x2x1
jax: 0.10.0
libtpu: 0.0.40
codegen_flags: <defaults>
</compile_context>

<pallas_src>
import jax
import jax.numpy as jnp
from jax.experimental import pallas as pl
from jax.experimental.pallas import tpu as pltpu

LANE = 128  # channel padding target (one vreg lane width)

# order of layers inside the packed slabs
_W_ORDER = ("gw1", "gw2", "gw3", "lw1", "lw2", "lw3")
_B_ORDER = ("gb1", "gb2", "gb3", "lb1", "lb2", "lb3")


def mymodel_kernel(x_ref, adj_ref, w_ref, b_ref, o_ref):
    """GB graphs per grid step.

    x_ref  : (GB, N, LANE)    node features, channel-padded with zeros (f32)
    adj_ref: (GB, N, N)       raw adjacency (pre-sigmoid, f32)
    w_ref  : (6, LANE, LANE)  packed (in, out) weights, zero-padded (bf16)
    b_ref  : (6, 1, LANE)     packed biases, zero-padded (f32)
    o_ref  : (GB, N, LANE)    output; the real scalar per node lives in lane 0
    """
    GB, N, _ = x_ref.shape

    x = x_ref[...].astype(jnp.float32)          # (GB, N, LANE)
    adj_raw = adj_ref[...].astype(jnp.float32)  # (GB, N, N)

    # ---- adjacency preprocessing: sigmoid, NaN -> 0, scale by 4 ----
    # sigmoid(x) = 0.5 * tanh(0.5 * x) + 0.5  (single EUP transcendental).
    adj_sig = 0.5 * jnp.tanh(0.5 * adj_raw) + 0.5
    # PyTorch ref zeroes NaNs *after* sigmoid; sigmoid/tanh is NaN-preserving
    # and never creates NaN from finite/inf inputs, so masking on the raw
    # input is equivalent.
    adj = jnp.where(adj_raw == adj_raw, adj_sig, jnp.zeros_like(adj_sig)) * 4.0
    adj_b = adj.astype(jnp.bfloat16)            # bf16 operand for the MXU

    # Fuse the graph axis into the MXU M-dimension for the shared-weight dots.
    h = x.reshape(GB * N, LANE)                 # (GB*N, LANE) f32

    # ---- GraphConvolution: adj @ (h @ W) + b (bf16 MXU, f32 accumulation) --
    def gcn(h2, i):
        support = jnp.dot(h2.astype(jnp.bfloat16), w_ref[i],
                          preferred_element_type=jnp.float32)   # (GB*N, LANE)
        support_b = support.reshape(GB, N, LANE).astype(jnp.bfloat16)
        out = jnp.einsum("gij,gjk->gik", adj_b, support_b,
                         preferred_element_type=jnp.float32)    # (GB, N, LANE)
        return out.reshape(GB * N, LANE) + b_ref[i]             # (1, LANE) bc

    h = gcn(h, 0)
    h = gcn(h, 1)
    h = gcn(h, 2)

    # ---- MLP head: relu(lin1), relu(lin2), lin3 ----
    def lin(h2, i):
        return jnp.dot(h2.astype(jnp.bfloat16), w_ref[i],
                       preferred_element_type=jnp.float32) + b_ref[i]

    h = jnp.maximum(lin(h, 3), 0.0)
    h = jnp.maximum(lin(h, 4), 0.0)
    h = lin(h, 5)

    o_ref[...] = h.reshape(GB, N, LANE).astype(o_ref.dtype)


def _pack_params(params):
    """Pack 12 small tensors into a (6,128,128) bf16 weight slab and (6,1,128) f32 bias slab."""
    def padw(w):
        out = jnp.zeros((LANE, LANE), jnp.float32)
        return out.at[: w.shape[0], : w.shape[1]].set(w.astype(jnp.float32))

    def padb(b):
        b = b.reshape(-1).astype(jnp.float32)
        out = jnp.zeros((1, LANE), jnp.float32)
        return out.at[0, : b.shape[0]].set(b)

    w_slab = jnp.stack([padw(params[k]) for k in _W_ORDER]).astype(jnp.bfloat16)
    b_slab = jnp.stack([padb(params[k]) for k in _B_ORDER])   # f32
    return w_slab, b_slab


def mymodel_forward(x, adj, params):
    """x: [B, N, C] float32, adj: [B, N, N] float32 -> [B, N, 1] float32."""
    B, N, C = x.shape
    w_slab, b_slab = _pack_params(params)

    # Graphs per grid step: keep 2 grid steps when B is even so both v7x
    # TensorCores get work; otherwise fuse everything into one step.
    num_steps = 2 if (B >= 2 and B % 2 == 0) else 1
    GB = B // num_steps
    # (GB*N should stay a multiple of 8 to keep the fused M dim sublane-aligned;
    #  true for any N % 8 == 0.)

    # lane-pad node features once on the host (padded lanes are zero, so the
    # zero-padded weights keep all padded columns identically zero downstream)
    x_p = jnp.zeros((B, N, LANE), jnp.float32).at[:, :, :C].set(
        x.astype(jnp.float32))

    out_padded = pl.pallas_call(
        mymodel_kernel,
        out_shape=jax.ShapeDtypeStruct((B, N, LANE), jnp.float32),
        grid=(num_steps,),
        in_specs=[
            pl.BlockSpec((GB, N, LANE), lambda b: (b, 0, 0)),     # x
            pl.BlockSpec((GB, N, N), lambda b: (b, 0, 0)),        # adj
            pl.BlockSpec((6, LANE, LANE), lambda b: (0, 0, 0)),   # weight slab
            pl.BlockSpec((6, 1, LANE), lambda b: (0, 0, 0)),      # bias slab
        ],
        out_specs=pl.BlockSpec((GB, N, LANE), lambda b: (b, 0, 0)),
        compiler_params=pltpu.CompilerParams(
            dimension_semantics=("parallel",)),                   # 2nd TC on v7x
    )(x_p, adj.astype(jnp.float32), w_slab, b_slab)

    # lane-dense store inside the kernel; take the real scalar column here
    return out_padded[:, :, :1]


def init_params(key, in_channels):
    """Deterministic init; nn.Linear / GCN weights stored pre-transposed to (in, out)."""
    h = 2 * in_channels
    ks = jax.random.split(key, 12)

    def u(k, shape, fan_in):
        bound = 1.0 / jnp.sqrt(fan_in)
        return jax.random.uniform(k, shape, jnp.float32, -bound, bound)

    return {
        # GraphConvolution weights (in, out), bias (1, out)
        "gw1": u(ks[0], (in_channels, h), in_channels), "gb1": u(ks[1], (1, h), in_channels),
        "gw2": u(ks[2], (h, h), h),                     "gb2": u(ks[3], (1, h), h),
        "gw3": u(ks[4], (h, h), h),                     "gb3": u(ks[5], (1, h), h),
        # nn.Linear weights transposed to (in, out), bias (1, out)
        "lw1": u(ks[6], (h, h), h),                     "lb1": u(ks[7], (1, h), h),
        "lw2": u(ks[8], (h, in_channels), h),           "lb2": u(ks[9], (1, in_channels), h),
        "lw3": u(ks[10], (in_channels, 1), in_channels), "lb3": u(ks[11], (1, 1), in_channels),
    }


if __name__ == "__main__":
    B = 8             # batch of graphs; each graph == one original module forward
    N = 16            # nodes per graph
    in_channels = 8

    key = jax.random.PRNGKey(0)
    kx, kadj, kp = jax.random.split(key, 3)

    x = jax.random.normal(kx, (B, N, in_channels), jnp.float32)
    adj = jax.random.normal(kadj, (B, N, N), jnp.float32)
    params = init_params(kp, in_channels)

    out = mymodel_forward(x, adj, params)
    out = jax.block_until_ready(out)
    assert out.shape == (B, N, 1) and out.dtype == jnp.float32
    assert bool(jnp.all(jnp.isfinite(out)))
    print("KERNEL_OK")
</pallas_src>

<mosaic_0001>
module attributes {stable_mosaic.version = 11 : i64} {
  func.func @mymodel_kernel(%arg0: i32, %arg1: memref<4x16x128xf32, #tpu.memory_space<vmem>>, %arg2: memref<4x16x16xf32, #tpu.memory_space<vmem>>, %arg3: memref<6x128x128xbf16, #tpu.memory_space<vmem>>, %arg4: memref<6x1x128xf32, #tpu.memory_space<vmem>>, %arg5: memref<4x16x128xf32, #tpu.memory_space<vmem>>) attributes {dimension_semantics = [#tpu.dimension_semantics<parallel>], iteration_bounds = array<i64: 2>, scalar_prefetch = 0 : i64, scratch_operands = 0 : i64, tpu.core_type = #tpu.core_type<tc>, window_params = [{transform_indices = @transform_0, window_bounds = array<i64: 4, 16, 128>}, {transform_indices = @transform_1, window_bounds = array<i64: 4, 16, 16>}, {pipeline_mode = #tpu.pipeline_mode<synchronous>, transform_indices = @transform_2, window_bounds = array<i64: 6, 128, 128>}, {pipeline_mode = #tpu.pipeline_mode<synchronous>, transform_indices = @transform_3, window_bounds = array<i64: 6, 1, 128>}, {transform_indices = @transform_4, window_bounds = array<i64: 4, 16, 128>}]} {
    %c0 = arith.constant 0 : index
    %c0_0 = arith.constant 0 : index
    %c0_1 = arith.constant 0 : index
    %0 = vector.load %arg1[%c0, %c0_0, %c0_1] : memref<4x16x128xf32, #tpu.memory_space<vmem>>, vector<4x16x128xf32>
    %c0_2 = arith.constant 0 : index
    %c0_3 = arith.constant 0 : index
    %c0_4 = arith.constant 0 : index
    %1 = vector.load %arg2[%c0_2, %c0_3, %c0_4] : memref<4x16x16xf32, #tpu.memory_space<vmem>>, vector<4x16x16xf32>
    %cst = arith.constant 5.000000e-01 : f32
    %2 = vector.broadcast %cst : f32 to vector<4x16x16xf32>
    %3 = arith.mulf %2, %1 : vector<4x16x16xf32>
    %4 = math.tanh %3 : vector<4x16x16xf32>
    %cst_5 = arith.constant 5.000000e-01 : f32
    %5 = vector.broadcast %cst_5 : f32 to vector<4x16x16xf32>
    %6 = arith.mulf %5, %4 : vector<4x16x16xf32>
    %cst_6 = arith.constant 5.000000e-01 : f32
    %7 = vector.broadcast %cst_6 : f32 to vector<4x16x16xf32>
    %8 = arith.addf %6, %7 : vector<4x16x16xf32>
    %9 = arith.cmpf oeq, %1, %1 : vector<4x16x16xf32>
    %cst_7 = arith.constant 0.000000e+00 : f32
    %10 = vector.broadcast %cst_7 : f32 to vector<4x16x16xf32>
    %11 = arith.select %9, %8, %10 : vector<4x16x16xi1>, vector<4x16x16xf32>
    %cst_8 = arith.constant 4.000000e+00 : f32
    %12 = vector.broadcast %cst_8 : f32 to vector<4x16x16xf32>
    %13 = arith.mulf %11, %12 : vector<4x16x16xf32>
    %14 = arith.truncf %13 : vector<4x16x16xf32> to vector<4x16x16xbf16>
    %15 = vector.shape_cast %0 : vector<4x16x128xf32> to vector<64x128xf32>
    %16 = arith.truncf %15 : vector<64x128xf32> to vector<64x128xbf16>
    %c0_9 = arith.constant 0 : index
    %c0_10 = arith.constant 0 : index
    %c0_11 = arith.constant 0 : index
    %17 = vector.load %arg3[%c0_9, %c0_10, %c0_11] : memref<6x128x128xbf16, #tpu.memory_space<vmem>>, vector<1x128x128xbf16>
    %18 = vector.shape_cast %17 : vector<1x128x128xbf16> to vector<128x128xbf16>
    %cst_12 = arith.constant dense<0.000000e+00> : vector<64x128xf32>
    %19 = tpu.matmul %16, %18, %cst_12 {dimension_numbers = #tpu.dot_dimension_numbers<[1], [0], [0], [1], [0, 0, 1, 1], [], []>} : vector<64x128xbf16>, vector<128x128xbf16>, vector<64x128xf32> -> vector<64x128xf32>
    %20 = vector.shape_cast %19 : vector<64x128xf32> to vector<4x16x128xf32>
    %21 = arith.truncf %20 : vector<4x16x128xf32> to vector<4x16x128xbf16>
    "tpu.trace_start"() <{level = 10 : i32, message = "gij,gjk->gik"}> : () -> ()
    %cst_13 = arith.constant dense<0.000000e+00> : vector<4x16x128xf32>
    %22 = tpu.matmul %14, %21, %cst_13 {dimension_numbers = #tpu.dot_dimension_numbers<[2], [1], [1], [2], [0, 0, 0, 1, 1, 2], [0], [0]>} : vector<4x16x16xbf16>, vector<4x16x128xbf16>, vector<4x16x128xf32> -> vector<4x16x128xf32>
    "tpu.trace_stop"() : () -> ()
    %23 = vector.shape_cast %22 : vector<4x16x128xf32> to vector<64x128xf32>
    %c0_14 = arith.constant 0 : index
    %c0_15 = arith.constant 0 : index
    %c0_16 = arith.constant 0 : index
    %24 = vector.load %arg4[%c0_14, %c0_15, %c0_16] : memref<6x1x128xf32, #tpu.memory_space<vmem>>, vector<1x1x128xf32>
    %25 = vector.shape_cast %24 : vector<1x1x128xf32> to vector<1x128xf32>
    %26 = vector.broadcast %25 : vector<1x128xf32> to vector<64x128xf32>
    %27 = arith.addf %23, %26 : vector<64x128xf32>
    %28 = arith.truncf %27 : vector<64x128xf32> to vector<64x128xbf16>
    %c1 = arith.constant 1 : index
    %c0_17 = arith.constant 0 : index
    %c0_18 = arith.constant 0 : index
    %29 = vector.load %arg3[%c1, %c0_17, %c0_18] : memref<6x128x128xbf16, #tpu.memory_space<vmem>>, vector<1x128x128xbf16>
    %30 = vector.shape_cast %29 : vector<1x128x128xbf16> to vector<128x128xbf16>
    %cst_19 = arith.constant dense<0.000000e+00> : vector<64x128xf32>
    %31 = tpu.matmul %28, %30, %cst_19 {dimension_numbers = #tpu.dot_dimension_numbers<[1], [0], [0], [1], [0, 0, 1, 1], [], []>} : vector<64x128xbf16>, vector<128x128xbf16>, vector<64x128xf32> -> vector<64x128xf32>
    %32 = vector.shape_cast %31 : vector<64x128xf32> to vector<4x16x128xf32>
    %33 = arith.truncf %32 : vector<4x16x128xf32> to vector<4x16x128xbf16>
    "tpu.trace_start"() <{level = 10 : i32, message = "gij,gjk->gik"}> : () -> ()
    %cst_20 = arith.constant dense<0.000000e+00> : vector<4x16x128xf32>
    %34 = tpu.matmul %14, %33, %cst_20 {dimension_numbers = #tpu.dot_dimension_numbers<[2], [1], [1], [2], [0, 0, 0, 1, 1, 2], [0], [0]>} : vector<4x16x16xbf16>, vector<4x16x128xbf16>, vector<4x16x128xf32> -> vector<4x16x128xf32>
    "tpu.trace_stop"() : () -> ()
    %35 = vector.shape_cast %34 : vector<4x16x128xf32> to vector<64x128xf32>
    %c1_21 = arith.constant 1 : index
    %c0_22 = arith.constant 0 : index
    %c0_23 = arith.constant 0 : index
    %36 = vector.load %arg4[%c1_21, %c0_22, %c0_23] : memref<6x1x128xf32, #tpu.memory_space<vmem>>, vector<1x1x128xf32>
    %37 = vector.shape_cast %36 : vector<1x1x128xf32> to vector<1x128xf32>
    %38 = vector.broadcast %37 : vector<1x128xf32> to vector<64x128xf32>
    %39 = arith.addf %35, %38 : vector<64x128xf32>
    %40 = arith.truncf %39 : vector<64x128xf32> to vector<64x128xbf16>
    %c2 = arith.constant 2 : index
    %c0_24 = arith.constant 0 : index
    %c0_25 = arith.constant 0 : index
    %41 = vector.load %arg3[%c2, %c0_24, %c0_25] : memref<6x128x128xbf16, #tpu.memory_space<vmem>>, vector<1x128x128xbf16>
    %42 = vector.shape_cast %41 : vector<1x128x128xbf16> to vector<128x128xbf16>
    %cst_26 = arith.constant dense<0.000000e+00> : vector<64x128xf32>
    %43 = tpu.matmul %40, %42, %cst_26 {dimension_numbers = #tpu.dot_dimension_numbers<[1], [0], [0], [1], [0, 0, 1, 1], [], []>} : vector<64x128xbf16>, vector<128x128xbf16>, vector<64x128xf32> -> vector<64x128xf32>
    %44 = vector.shape_cast %43 : vector<64x128xf32> to vector<4x16x128xf32>
    %45 = arith.truncf %44 : vector<4x16x128xf32> to vector<4x16x128xbf16>
    "tpu.trace_start"() <{level = 10 : i32, message = "gij,gjk->gik"}> : () -> ()
    %cst_27 = arith.constant dense<0.000000e+00> : vector<4x16x128xf32>
    %46 = tpu.matmul %14, %45, %cst_27 {dimension_numbers = #tpu.dot_dimension_numbers<[2], [1], [1], [2], [0, 0, 0, 1, 1, 2], [0], [0]>} : vector<4x16x16xbf16>, vector<4x16x128xbf16>, vector<4x16x128xf32> -> vector<4x16x128xf32>
    "tpu.trace_stop"() : () -> ()
    %47 = vector.shape_cast %46 : vector<4x16x128xf32> to vector<64x128xf32>
    %c2_28 = arith.constant 2 : index
    %c0_29 = arith.constant 0 : index
    %c0_30 = arith.constant 0 : index
    %48 = vector.load %arg4[%c2_28, %c0_29, %c0_30] : memref<6x1x128xf32, #tpu.memory_space<vmem>>, vector<1x1x128xf32>
    %49 = vector.shape_cast %48 : vector<1x1x128xf32> to vector<1x128xf32>
    %50 = vector.broadcast %49 : vector<1x128xf32> to vector<64x128xf32>
    %51 = arith.addf %47, %50 : vector<64x128xf32>
    %52 = arith.truncf %51 : vector<64x128xf32> to vector<64x128xbf16>
    %c3 = arith.constant 3 : index
    %c0_31 = arith.constant 0 : index
    %c0_32 = arith.constant 0 : index
    %53 = vector.load %arg3[%c3, %c0_31, %c0_32] : memref<6x128x128xbf16, #tpu.memory_space<vmem>>, vector<1x128x128xbf16>
    %54 = vector.shape_cast %53 : vector<1x128x128xbf16> to vector<128x128xbf16>
    %cst_33 = arith.constant dense<0.000000e+00> : vector<64x128xf32>
    %55 = tpu.matmul %52, %54, %cst_33 {dimension_numbers = #tpu.dot_dimension_numbers<[1], [0], [0], [1], [0, 0, 1, 1], [], []>} : vector<64x128xbf16>, vector<128x128xbf16>, vector<64x128xf32> -> vector<64x128xf32>
    %c3_34 = arith.constant 3 : index
    %c0_35 = arith.constant 0 : index
    %c0_36 = arith.constant 0 : index
    %56 = vector.load %arg4[%c3_34, %c0_35, %c0_36] : memref<6x1x128xf32, #tpu.memory_space<vmem>>, vector<1x1x128xf32>
    %57 = vector.shape_cast %56 : vector<1x1x128xf32> to vector<1x128xf32>
    %58 = vector.broadcast %57 : vector<1x128xf32> to vector<64x128xf32>
    %59 = arith.addf %55, %58 : vector<64x128xf32>
    %cst_37 = arith.constant 0.000000e+00 : f32
    %60 = vector.broadcast %cst_37 : f32 to vector<64x128xf32>
    %61 = arith.maximumf %59, %60 : vector<64x128xf32>
    %62 = arith.truncf %61 : vector<64x128xf32> to vector<64x128xbf16>
    %c4 = arith.constant 4 : index
    %c0_38 = arith.constant 0 : index
    %c0_39 = arith.constant 0 : index
    %63 = vector.load %arg3[%c4, %c0_38, %c0_39] : memref<6x128x128xbf16, #tpu.memory_space<vmem>>, vector<1x128x128xbf16>
    %64 = vector.shape_cast %63 : vector<1x128x128xbf16> to vector<128x128xbf16>
    %cst_40 = arith.constant dense<0.000000e+00> : vector<64x128xf32>
    %65 = tpu.matmul %62, %64, %cst_40 {dimension_numbers = #tpu.dot_dimension_numbers<[1], [0], [0], [1], [0, 0, 1, 1], [], []>} : vector<64x128xbf16>, vector<128x128xbf16>, vector<64x128xf32> -> vector<64x128xf32>
    %c4_41 = arith.constant 4 : index
    %c0_42 = arith.constant 0 : index
    %c0_43 = arith.constant 0 : index
    %66 = vector.load %arg4[%c4_41, %c0_42, %c0_43] : memref<6x1x128xf32, #tpu.memory_space<vmem>>, vector<1x1x128xf32>
    %67 = vector.shape_cast %66 : vector<1x1x128xf32> to vector<1x128xf32>
    %68 = vector.broadcast %67 : vector<1x128xf32> to vector<64x128xf32>
    %69 = arith.addf %65, %68 : vector<64x128xf32>
    %cst_44 = arith.constant 0.000000e+00 : f32
    %70 = vector.broadcast %cst_44 : f32 to vector<64x128xf32>
    %71 = arith.maximumf %69, %70 : vector<64x128xf32>
    %72 = arith.truncf %71 : vector<64x128xf32> to vector<64x128xbf16>
    %c5 = arith.constant 5 : index
    %c0_45 = arith.constant 0 : index
    %c0_46 = arith.constant 0 : index
    %73 = vector.load %arg3[%c5, %c0_45, %c0_46] : memref<6x128x128xbf16, #tpu.memory_space<vmem>>, vector<1x128x128xbf16>
    %74 = vector.shape_cast %73 : vector<1x128x128xbf16> to vector<128x128xbf16>
    %cst_47 = arith.constant dense<0.000000e+00> : vector<64x128xf32>
    %75 = tpu.matmul %72, %74, %cst_47 {dimension_numbers = #tpu.dot_dimension_numbers<[1], [0], [0], [1], [0, 0, 1, 1], [], []>} : vector<64x128xbf16>, vector<128x128xbf16>, vector<64x128xf32> -> vector<64x128xf32>
    %c5_48 = arith.constant 5 : index
    %c0_49 = arith.constant 0 : index
    %c0_50 = arith.constant 0 : index
    %76 = vector.load %arg4[%c5_48, %c0_49, %c0_50] : memref<6x1x128xf32, #tpu.memory_space<vmem>>, vector<1x1x128xf32>
    %77 = vector.shape_cast %76 : vector<1x1x128xf32> to vector<1x128xf32>
    %78 = vector.broadcast %77 : vector<1x128xf32> to vector<64x128xf32>
    %79 = arith.addf %75, %78 : vector<64x128xf32>
    %80 = vector.shape_cast %79 : vector<64x128xf32> to vector<4x16x128xf32>
    %c0_51 = arith.constant 0 : index
    %c0_52 = arith.constant 0 : index
    %c0_53 = arith.constant 0 : index
    %81 = vector.load %arg5[%c0_51, %c0_52, %c0_53] : memref<4x16x128xf32, #tpu.memory_space<vmem>>, vector<4x16x128xf32>
    tpu.vector_store %arg5[%c0_51, %c0_52, %c0_53], %80 {strides = array<i32>} : memref<4x16x128xf32, #tpu.memory_space<vmem>>, vector<4x16x128xf32>,
    return
  }
  func.func @transform_0(%arg0: i32) -> (i32, i32, i32) {
    %c0_i32 = arith.constant 0 : i32
    %c0_i32_0 = arith.constant 0 : i32
    %c0_i32_1 = arith.constant 0 : i32
    return %arg0, %c0_i32, %c0_i32_0 : i32, i32, i32
  }
  func.func @transform_1(%arg0: i32) -> (i32, i32, i32) {
    %c0_i32 = arith.constant 0 : i32
    %c0_i32_0 = arith.constant 0 : i32
    %c0_i32_1 = arith.constant 0 : i32
    return %arg0, %c0_i32, %c0_i32_0 : i32, i32, i32
  }
  func.func @transform_2(%arg0: i32) -> (i32, i32, i32) {
    %c0_i32 = arith.constant 0 : i32
    %c0_i32_0 = arith.constant 0 : i32
    %c0_i32_1 = arith.constant 0 : i32
    %c0_i32_2 = arith.constant 0 : i32
    return %c0_i32, %c0_i32_0, %c0_i32_1 : i32, i32, i32
  }
  func.func @transform_3(%arg0: i32) -> (i32, i32, i32) {
    %c0_i32 = arith.constant 0 : i32
    %c0_i32_0 = arith.constant 0 : i32
    %c0_i32_1 = arith.constant 0 : i32
    %c0_i32_2 = arith.constant 0 : i32
    return %c0_i32, %c0_i32_0, %c0_i32_1 : i32, i32, i32
  }
  func.func @transform_4(%arg0: i32) -> (i32, i32, i32) {
    %c0_i32 = arith.constant 0 : i32
    %c0_i32_0 = arith.constant 0 : i32
    %c0_i32_1 = arith.constant 0 : i32
    return %arg0, %c0_i32, %c0_i32_0 : i32, i32, i32
  }
}

</mosaic_0001>

<llo_original>
// kernel: tpu_custom_call.1
$region0: #{tpu_custom_call.1}
  #allocation0 [shape = 'u32[]', space=smem, size = 0x4, offset = 0x4, fixed_abs, tag = 'smem constant byte address 0x4 - core index']
  #allocation1 [shape = 'u32[144,128]{1,0:T(1,128)}', space=vmem, size = 0x12000, scoped, tag = 'internal scratch']
  %s0 = inlined_call_operand.hbm [shape: f32[8,16,128], index: 0, kind: input, shape index: {}]
  %s1 = inlined_call_operand.hbm [shape: f32[8,16,16], index: 1, kind: input, shape index: {}]
  %s2 = inlined_call_operand.hbm [shape: bf16[6,128,128], index: 2, kind: input, shape index: {}]
  %s3 = inlined_call_operand.vmem [shape: f32[6,1,128], index: 3, kind: input, shape index: {}]
  %s4 = inlined_call_operand.hbm [shape: f32[8,16,128], index: 4, kind: output, shape index: {}]
  %s5 = sld [smem:[#allocation0]]
  $region61: #{tpu_custom_call.1} parent=0
    _
  %s7 = ssub.s32 1, %s5
  %s8 = scalar_select 0, %s7, %s5
  $region1: #{tpu_custom_call.1} parent=0
    #allocation2 [shape = 'u8[65536]{0}', space=vmem, size = 0x10000, scoped, tag = 'input window, operand 0']
    #allocation3 [shape = 's32[2]{0}', space=sflag, size = 0x8, scoped, tag = 'scoped memory for tpu_custom_call.1']
    #allocation4 [shape = 's32[2]{0}', space=sflag, size = 0x8, scoped, tag = 'scoped memory for tpu_custom_call.1']
    #allocation5 [shape = 'u8[65536]{0}', space=vmem, size = 0x10000, scoped, tag = 'input window, operand 1']
    #allocation6 [shape = 's32[2]{0}', space=sflag, size = 0x8, scoped, tag = 'scoped memory for tpu_custom_call.1']
    #allocation7 [shape = 'u8[196608]{0}', space=vmem, size = 0x30000, scoped, tag = 'input window, operand 2, single buffered']
    #allocation8 [shape = 'u8[65536]{0}', space=vmem, size = 0x10000, scoped, tag = 'output window, operand 0']
    %9 = vsyncpa [#allocation3], 0
    %s10 = scalar_lea.sflag [#allocation3], 1
    %11 = vsyncpa %s10, 0
    %12 = vsyncpa [#allocation6], 0
    %s13 = scalar_lea.sflag [#allocation6], 1
    %14 = vsyncpa %s13, 0
    %15 = vsyncpa [#allocation4], 0
    %s16 = scalar_lea.sflag [#allocation4], 1
    %17 = vsyncpa %s16, 0
    loop: start=0, step=1, limit=4
    $region2: #{tpu_custom_call.1} parent=1 // loop_pre_header
      _
    $region3: #{tpu_custom_call.1} parent=1 // loop_header
      %s19 = sphi 0, %s23
      %p20 = scmp.ge.s32.totalorder %s19, 4
      %s29 = sphi 0, %s31
      %s32 = sphi 0, %s29
      %s33 = sphi 0, %s32
      %s49 = sphi 0, %s33
      %s55 = sphi 0, %s57
      %s58 = sphi 0, %s55
      %s59 = sphi 0, %s58
      %s75 = sphi 0, %s59
      %s79 = sphi 0, %s79
      %s81 = sphi 0, %s79
      %s82 = sphi 0, %s81
      %s96 = sphi 0, %s82
      %s100 = sphi 0, %s100
      %s102 = sphi 0, %s100
      %s103 = sphi 0, %s102
      %s117 = sphi 0, %s103
      %s123 = sphi 0, %s125
      %s126 = sphi 0, %s123
      %s127 = sphi 0, %s126
      %s143 = sphi 0, %s127
    $region4: #{tpu_custom_call.1} parent=1 // loop_header_branch
      %22 = sbr.rel (%p20) target = $region8
    $region5: #{tpu_custom_call.1} parent=1 // loop_body
      %s24 = ssub.s32 %s19, 1
      %s25 = ssub.s32 %s19, 2
      %s26 = sadd.s32 %s19, 1
      %s27 = ssub.s32 %s19, %s26
      %p28 = scmp.eq.s32.totalorder %s27, 0
      %s30 = sadd.s32 %s29, 1
      %s31 = scalar_select %p28, %s29, %s30
      %p34 = pneg %p28
      %p35 = scmp.eq.s32.totalorder %s19, 1
      %p36 = por %p34, %p35
      %p37 = scmp.ne.s32.totalorder %s29, %s32
      %p38 = scmp.eq.s32.totalorder %s19, 0
      %p39 = por %p37, %p38
      %p40 = scmp.ne.s32.totalorder %s29, %s32
      %p41 = scmp.eq.s32.totalorder %s24, 1
      %p42 = por %p40, %p41
      %p43 = scmp.ne.s32.totalorder %s32, %s33
      %p44 = scmp.eq.s32.totalorder %s24, 0
      %p45 = por %p43, %p44
      %p46 = scmp.ne.s32.totalorder %s32, %s33
      %p47 = scmp.eq.s32.totalorder %s25, 1
      %p48 = por %p46, %p47
      %p50 = scmp.ne.s32.totalorder %s33, %s49
      %p51 = scmp.eq.s32.totalorder %s25, 0
      %p52 = por %p50, %p51
      %s53 = ssub.s32 %s19, %s26
      %p54 = scmp.eq.s32.totalorder %s53, 0
      %s56 = sadd.s32 %s55, 1
      %s57 = scalar_select %p54, %s55, %s56
      %p60 = pneg %p54
      %p61 = scmp.eq.s32.totalorder %s19, 1
      %p62 = por %p60, %p61
      %p63 = scmp.ne.s32.totalorder %s55, %s58
      %p64 = scmp.eq.s32.totalorder %s19, 0
      %p65 = por %p63, %p64
      %p66 = scmp.ne.s32.totalorder %s55, %s58
      %p67 = scmp.eq.s32.totalorder %s24, 1
      %p68 = por %p66, %p67
      %p69 = scmp.ne.s32.totalorder %s58, %s59
      %p70 = scmp.eq.s32.totalorder %s24, 0
      %p71 = por %p69, %p70
      %p72 = scmp.ne.s32.totalorder %s58, %s59
      %p73 = scmp.eq.s32.totalorder %s25, 1
      %p74 = por %p72, %p73
      %p76 = scmp.ne.s32.totalorder %s59, %s75
      %p77 = scmp.eq.s32.totalorder %s25, 0
      %p78 = por %p76, %p77
      %s80 = sadd.s32 %s79, 1
      %p83 = scmp.eq.s32.totalorder %s19, 1
      %p84 = scmp.ne.s32.totalorder %s79, %s81
      %p85 = scmp.eq.s32.totalorder %s19, 0
      %p86 = por %p84, %p85
      %p87 = scmp.ne.s32.totalorder %s79, %s81
      %p88 = scmp.eq.s32.totalorder %s24, 1
      %p89 = por %p87, %p88
      %p90 = scmp.ne.s32.totalorder %s81, %s82
      %p91 = scmp.eq.s32.totalorder %s24, 0
      %p92 = por %p90, %p91
      %p93 = scmp.ne.s32.totalorder %s81, %s82
      %p94 = scmp.eq.s32.totalorder %s25, 1
      %p95 = por %p93, %p94
      %p97 = scmp.ne.s32.totalorder %s82, %s96
      %p98 = scmp.eq.s32.totalorder %s25, 0
      %p99 = por %p97, %p98
      %s101 = sadd.s32 %s100, 1
      %p104 = scmp.eq.s32.totalorder %s19, 1
      %p105 = scmp.ne.s32.totalorder %s100, %s102
      %p106 = scmp.eq.s32.totalorder %s19, 0
      %p107 = por %p105, %p106
      %p108 = scmp.ne.s32.totalorder %s100, %s102
      %p109 = scmp.eq.s32.totalorder %s24, 1
      %p110 = por %p108, %p109
      %p111 = scmp.ne.s32.totalorder %s102, %s103
      %p112 = scmp.eq.s32.totalorder %s24, 0
      %p113 = por %p111, %p112
      %p114 = scmp.ne.s32.totalorder %s102, %s103
      %p115 = scmp.eq.s32.totalorder %s25, 1
      %p116 = por %p114, %p115
      %p118 = scmp.ne.s32.totalorder %s103, %s117
      %p119 = scmp.eq.s32.totalorder %s25, 0
      %p120 = por %p118, %p119
      %s121 = ssub.s32 %s19, %s26
      %p122 = scmp.eq.s32.totalorder %s121, 0
      %s124 = sadd.s32 %s123, 1
      %s125 = scalar_select %p122, %s123, %s124
      %p128 = pneg %p122
      %p129 = scmp.eq.s32.totalorder %s19, 1
      %p130 = por %p128, %p129
      %p131 = scmp.ne.s32.totalorder %s123, %s126
      %p132 = scmp.eq.s32.totalorder %s19, 0
      %p133 = por %p131, %p132
      %p134 = scmp.ne.s32.totalorder %s123, %s126
      %p135 = scmp.eq.s32.totalorder %s24, 1
      %p136 = por %p134, %p135
      %p137 = scmp.ne.s32.totalorder %s126, %s127
      %p138 = scmp.eq.s32.totalorder %s24, 0
      %p139 = por %p137, %p138
      %p140 = scmp.ne.s32.totalorder %s126, %s127
      %p141 = scmp.eq.s32.totalorder %s25, 1
      %p142 = por %p140, %p141
      %p144 = scmp.ne.s32.totalorder %s127, %s143
      %p145 = scmp.eq.s32.totalorder %s25, 0
      %p146 = por %p144, %p145
      %p147 = scmp.le.s32.totalorder 1, %s19
      %p148 = scmp.lt.s32.totalorder %s19, 3
      %p149 = pnand %p147, %p148
      %p150 = pneg %p149
      // Predicated region
      $region9: #{tpu_custom_call.1} parent=5 // pred_check
        _
      $region10: #{tpu_custom_call.1} parent=5 // pred_check_branch
        %152 = sbr.rel (%p149) target = $region12
      $region11: #{tpu_custom_call.1} parent=5 // pred_region
        %s153 = ssub.s32 %s19, 1
        // Predicated region
        $region13: #{tpu_custom_call.1} parent=11 // pred_check
          %p154 = pneg %p92
        $region14: #{tpu_custom_call.1} parent=11 // pred_check_branch
          %156 = sbr.rel (%p154) target = $region16
        $region15: #{tpu_custom_call.1} parent=11 // pred_region
          %s158 = ssub.s32 6144, 6144
          %159 = vsyncadd [#allocation6], %s158
          %s160 = sshll.u32 [#allocation7], 4
          %s161 = int_to_ptr.vmem [resolvable:$true] %s160
          %166 = dma.hbm_to_vmem [thread:$0]  %s2, 6144, %s161, [#allocation6], 64, 64, 4
        $region16: #{tpu_custom_call.1} parent=11 // pred_fallthru
          _
        // Predicated region
        $region17: #{tpu_custom_call.1} parent=11 // pred_check
          %p167 = pneg %p113
        $region18: #{tpu_custom_call.1} parent=11 // pred_check_branch
          %169 = sbr.rel (%p167) target = $region20
        $region19: #{tpu_custom_call.1} parent=11 // pred_region
          _
        $region20: #{tpu_custom_call.1} parent=11 // pred_fallthru
          _
      $region12: #{tpu_custom_call.1} parent=5 // pred_fallthru
        _
      %p170 = scmp.lt.s32.totalorder %s19, 2
      // Predicated region
      $region21: #{tpu_custom_call.1} parent=5 // pred_check
        %p171 = pneg %p170
      $region22: #{tpu_custom_call.1} parent=5 // pred_check_branch
        %173 = sbr.rel (%p171) target = $region24
      $region23: #{tpu_custom_call.1} parent=5 // pred_region
        // Predicated region
        $region25: #{tpu_custom_call.1} parent=23 // pred_check
          %p174 = pneg %p39
        $region26: #{tpu_custom_call.1} parent=23 // pred_check_branch
          %176 = sbr.rel (%p174) target = $region28
        $region27: #{tpu_custom_call.1} parent=23 // pred_region
          %s177 = sand.u32 %s29, 1
          %s178 = scalar_lea.sflag [#allocation3], %s177
          %s179 = sand.u32 %s29, 1
          %s180 = smul.addr %s179, 64
          %s181 = scalar_lea.vmem [#allocation2], %s180
          %s182 = smul.u32 4, %s19
          %s184 = ssub.s32 1024, 1024
          %185 = vsyncadd %s178, %s184
          %s186 = smul.addr %s182, 2
          %s187 = smul.addr %s186, 128
          %s188 = scalar_lea.hbm %s0, %s187
          %s189 = sshll.u32 %s181, 4
          %s190 = int_to_ptr.vmem [resolvable:$true] %s189
          %195 = dma.hbm_to_vmem [thread:$0]  %s188, 1024, %s190, %s178, 128, 128, 8
        $region28: #{tpu_custom_call.1} parent=23 // pred_fallthru
          _
        // Predicated region
        $region29: #{tpu_custom_call.1} parent=23 // pred_check
          %p196 = pneg %p65
        $region30: #{tpu_custom_call.1} parent=23 // pred_check_branch
          %198 = sbr.rel (%p196) target = $region32
        $region31: #{tpu_custom_call.1} parent=23 // pred_region
          %s199 = sand.u32 %s19, 1
          %s200 = scalar_lea.sflag [#allocation6], %s199
          %s201 = sand.u32 %s55, 1
          %s202 = smul.addr %s201, 64
          %s203 = scalar_lea.vmem [#allocation5], %s202
          %s204 = smul.u32 4, %s19
          %s206 = ssub.s32 1024, 1024
          %207 = vsyncadd %s200, %s206
          %s208 = smul.addr %s204, 2
          %s209 = smul.addr %s208, 128
          %s210 = scalar_lea.hbm %s1, %s209
          %s211 = sshll.u32 %s203, 4
          %s212 = int_to_ptr.vmem [resolvable:$true] %s211
          %217 = dma.hbm_to_vmem [thread:$0]  %s210, 1024, %s212, %s200, 128, 128, 8
        $region32: #{tpu_custom_call.1} parent=23 // pred_fallthru
          _
      $region24: #{tpu_custom_call.1} parent=5 // pred_fallthru
        _
      %p218 = scmp.le.s32.totalorder 1, %s19
      %p219 = scmp.lt.s32.totalorder %s19, 3
      %p220 = pnand %p218, %p219
      %p221 = pneg %p220
      // Predicated region
      $region33: #{tpu_custom_call.1} parent=5 // pred_check
        _
      $region34: #{tpu_custom_call.1} parent=5 // pred_check_branch
        %223 = sbr.rel (%p220) target = $region36
      $region35: #{tpu_custom_call.1} parent=5 // pred_region
        %s224 = ssub.s32 %s19, 1
        %s225 = sand.u32 %s32, 1
        %s226 = scalar_lea.sflag [#allocation3], %s225
        %s227 = sand.u32 %s32, 1
        %s228 = smul.addr %s227, 64
        %s229 = scalar_lea.vmem [#allocation2], %s228
        // Predicated region
        $region37: #{tpu_custom_call.1} parent=35 // pred_check
          %p230 = pneg %p45
        $region38: #{tpu_custom_call.1} parent=35 // pred_check_branch
          %232 = sbr.rel (%p230) target = $region40
        $region39: #{tpu_custom_call.1} parent=35 // pred_region
          %233 = dma.done %s226, 1024
        $region40: #{tpu_custom_call.1} parent=35 // pred_fallthru
          _
        %s234 = sand.u32 %s24, 1
        %s235 = scalar_lea.sflag [#allocation6], %s234
        %s236 = sand.u32 %s58, 1
        %s237 = smul.addr %s236, 64
        %s238 = scalar_lea.vmem [#allocation5], %s237
        // Predicated region
        $region41: #{tpu_custom_call.1} parent=35 // pred_check
          %p239 = pneg %p71
        $region42: #{tpu_custom_call.1} parent=35 // pred_check_branch
          %241 = sbr.rel (%p239) target = $region44
        $region43: #{tpu_custom_call.1} parent=35 // pred_region
          %242 = dma.done %s235, 1024
        $region44: #{tpu_custom_call.1} parent=35 // pred_fallthru
          _
        // Predicated region
        $region45: #{tpu_custom_call.1} parent=35 // pred_check
          %p243 = pneg %p92
        $region46: #{tpu_custom_call.1} parent=35 // pred_check_branch
          %245 = sbr.rel (%p243) target = $region48
        $region47: #{tpu_custom_call.1} parent=35 // pred_region
          %246 = dma.done [#allocation6], 6144
        $region48: #{tpu_custom_call.1} parent=35 // pred_fallthru
          _
        %s247 = sand.u32 %s32, 1
        %s248 = scalar_lea.sflag [#allocation3], %s247
        %s249 = sand.u32 %s32, 1
        %s250 = smul.addr %s249, 64
        %s251 = scalar_lea.vmem [#allocation2], %s250
        %p252 = pneg %p45
        %p253 = pneg %p42
        %s254 = sand.u32 %s24, 1
        %s255 = scalar_lea.sflag [#allocation6], %s254
        %s256 = sand.u32 %s58, 1
        %s257 = smul.addr %s256, 64
        %s258 = scalar_lea.vmem [#allocation5], %s257
        %p259 = pneg %p71
        %p260 = pneg %p68
        %p261 = pneg %p92
        %p262 = pneg %p89
        %p263 = pneg %p113
        %p264 = pneg %p110
        %p265 = pneg %p139
        %p266 = pneg %p136
        %s267 = sand.u32 %s126, 1
        %s268 = scalar_lea.sflag [#allocation4], %s267
        %s269 = sand.u32 %s126, 1
        %s270 = smul.addr %s269, 64
        %s271 = scalar_lea.vmem [#allocation8], %s270
        %s272 = smul.u32 4, %s24
        %s273 = smul.u32 4, %s24
        %s274 = smul.u32 4, %s24
        %v276 = vld [vmem:[%s229] sm:$0xff]
        %v277 = vld [vmem:[%s229 + $0x8] sm:$0xff]
        %v278 = vld [vmem:[%s229 + $0x10] sm:$0xff]
        %v279 = vld [vmem:[%s229 + $0x18] sm:$0xff]
        %v280 = vld [vmem:[%s229 + $0x20] sm:$0xff]
        %v281 = vld [vmem:[%s229 + $0x28] sm:$0xff]
        %v282 = vld [vmem:[%s229 + $0x30] sm:$0xff]
        %v283 = vld [vmem:[%s229 + $0x38] sm:$0xff]
        %v284 = vld [vmem:[%s238] sm:$0xff]
        %v285 = vld [vmem:[%s238 + $0x8] sm:$0xff]
        %v286 = vld [vmem:[%s238 + $0x10] sm:$0xff]
        %v287 = vld [vmem:[%s238 + $0x18] sm:$0xff]
        %v288 = vld [vmem:[%s238 + $0x20] sm:$0xff]
        %v289 = vld [vmem:[%s238 + $0x28] sm:$0xff]
        %v290 = vld [vmem:[%s238 + $0x30] sm:$0xff]
        %v291 = vld [vmem:[%s238 + $0x38] sm:$0xff]
        %v292 = vmul.f32 %v284, 0.5
        %v293 = vmul.f32 %v285, 0.5
        %v294 = vmul.f32 %v286, 0.5
        %v295 = vmul.f32 %v287, 0.5
        %v296 = vmul.f32 %v288, 0.5
        %v297 = vmul.f32 %v289, 0.5
        %v298 = vmul.f32 %v290, 0.5
        %v299 = vmul.f32 %v291, 0.5
        %v300 = vtanh.pop %v292
        %v301 = vtanh.pop %v293
        %v302 = vtanh.pop %v294
        %v303 = vtanh.pop %v295
        %v304 = vtanh.pop %v296
        %v305 = vtanh.pop %v297
        %v306 = vtanh.pop %v298
        %v307 = vtanh.pop %v299
        %v308 = vmul.f32 %v300, 0.5
        %v309 = vmul.f32 %v301, 0.5
        %v310 = vmul.f32 %v302, 0.5
        %v311 = vmul.f32 %v303, 0.5
        %v312 = vmul.f32 %v304, 0.5
        %v313 = vmul.f32 %v305, 0.5
        %v314 = vmul.f32 %v306, 0.5
        %v315 = vmul.f32 %v307, 0.5
        %v316 = vadd.f32 %v308, 0.5
        %v317 = vadd.f32 %v309, 0.5
        %v318 = vadd.f32 %v310, 0.5
        %v319 = vadd.f32 %v311, 0.5
        %v320 = vadd.f32 %v312, 0.5
        %v321 = vadd.f32 %v313, 0.5
        %v322 = vadd.f32 %v314, 0.5
        %v323 = vadd.f32 %v315, 0.5
        %vm324 = vcmp.eq.f32.partialorder %v284, %v284
        %vm325 = vcmp.eq.f32.partialorder %v285, %v285
        %vm326 = vcmp.eq.f32.partialorder %v286, %v286
        %vm327 = vcmp.eq.f32.partialorder %v287, %v287
        %vm328 = vcmp.eq.f32.partialorder %v288, %v288
        %vm329 = vcmp.eq.f32.partialorder %v289, %v289
        %vm330 = vcmp.eq.f32.partialorder %v290, %v290
        %vm331 = vcmp.eq.f32.partialorder %v291, %v291
        %v332 = vsel %vm324, %v316, 0.0
        %v333 = vsel %vm325, %v317, 0.0
        %v334 = vsel %vm326, %v318, 0.0
        %v335 = vsel %vm327, %v319, 0.0
        %v336 = vsel %vm328, %v320, 0.0
        %v337 = vsel %vm329, %v321, 0.0
        %v338 = vsel %vm330, %v322, 0.0
        %v339 = vsel %vm331, %v323, 0.0
        %v340 = vmul.f32 %v332, 4.0
        %v341 = vmul.f32 %v333, 4.0
        %v342 = vmul.f32 %v334, 4.0
        %v343 = vmul.f32 %v335, 4.0
        %v344 = vmul.f32 %v336, 4.0
        %v345 = vmul.f32 %v337, 4.0
        %v346 = vmul.f32 %v338, 4.0
        %v347 = vmul.f32 %v339, 4.0
        %v348 = vpack.c.bf16 %v341, %v340
        %v349 = vpack.c.bf16 %v343, %v342
        %v350 = vpack.c.bf16 %v345, %v344
        %v351 = vpack.c.bf16 %v347, %v346
        %v352 = vpack.c.bf16 %v277, %v276
        %v353 = vpack.c.bf16 %v279, %v278
        %v354 = vpack.c.bf16 %v281, %v280
        %v355 = vpack.c.bf16 %v283, %v282
        %v356 = vld [vmem:[#allocation7] sm:$0xf]
        %v357 = vld [vmem:[#allocation7 + $0x4] sm:$0xf]
        %v358 = vld [vmem:[#allocation7 + $0x8] sm:$0xf]
        %v359 = vld [vmem:[#allocation7 + $0xc] sm:$0xf]
        %v360 = vld [vmem:[#allocation7 + $0x10] sm:$0xf]
        %v361 = vld [vmem:[#allocation7 + $0x14] sm:$0xf]
        %v362 = vld [vmem:[#allocation7 + $0x18] sm:$0xf]
        %v363 = vld [vmem:[#allocation7 + $0x1c] sm:$0xf]
        %v364 = vld [vmem:[#allocation7 + $0x20] sm:$0xf]
        %v365 = vld [vmem:[#allocation7 + $0x24] sm:$0xf]
        %v366 = vld [vmem:[#allocation7 + $0x28] sm:$0xf]
        %v367 = vld [vmem:[#allocation7 + $0x2c] sm:$0xf]
        %v368 = vld [vmem:[#allocation7 + $0x30] sm:$0xf]
        %v369 = vld [vmem:[#allocation7 + $0x34] sm:$0xf]
        %v370 = vld [vmem:[#allocation7 + $0x38] sm:$0xf]
        %v371 = vld [vmem:[#allocation7 + $0x3c] sm:$0xf]
        %v388 = vunpack.c.l.b16 %v356
        %v389 = vunpack.c.l.b16 %v357
        %v390 = vunpack.c.l.b16 %v358
        %v391 = vunpack.c.l.b16 %v359
        %v392 = vunpack.c.l.b16 %v360
        %v393 = vunpack.c.l.b16 %v361
        %v394 = vunpack.c.l.b16 %v362
        %v395 = vunpack.c.l.b16 %v363
        %v396 = vunpack.c.l.b16 %v364
        %v397 = vunpack.c.l.b16 %v365
        %v398 = vunpack.c.l.b16 %v366
        %v399 = vunpack.c.l.b16 %v367
        %v400 = vunpack.c.l.b16 %v368
        %v401 = vunpack.c.l.b16 %v369
        %v402 = vunpack.c.l.b16 %v370
        %v403 = vunpack.c.l.b16 %v371
        %v404 = vpack.c.b16 %v389, %v388
        %v405 = vpack.c.b16 %v391, %v390
        %v406 = vpack.c.b16 %v393, %v392
        %v407 = vpack.c.b16 %v395, %v394
        %v408 = vpack.c.b16 %v397, %v396
        %v409 = vpack.c.b16 %v399, %v398
        %v410 = vpack.c.b16 %v401, %v400
        %v411 = vpack.c.b16 %v403, %v402
        %420 = vmatprep.subr.bf16.mxu0 0
        %421 = vmatpush1.bf16.msra.mxu0 %v404
        %422 = vmatprep.subr.bf16.mxu0 0
        %423 = vmatpush1.bf16.msra.mxu0 %v405
        %424 = vmatprep.subr.bf16.mxu0 0
        %425 = vmatpush1.bf16.msra.mxu0 %v406
        %426 = vmatprep.subr.bf16.mxu0 0
        %427 = vmatpush1.bf16.msra.mxu0 %v407
        %428 = vmatprep.subr.bf16.mxu0 0
        %429 = vmatpush1.bf16.msra.mxu0 %v408
        %430 = vmatprep.subr.bf16.mxu0 0
        %431 = vmatpush1.bf16.msra.mxu0 %v409
        %432 = vmatprep.subr.bf16.mxu0 0
        %433 = vmatpush1.bf16.msra.mxu0 %v410
        %434 = vmatprep.subr.bf16.mxu0 0
        %435 = vmatpush1.bf16.msra.mxu0 %v411
        %436 = vmatprep.subr.bf16.mxu0 0
        %437 = vmatpush1.bf16.msra.mxu0 0
        %438 = vmatprep.subr.bf16.mxu0 0
        %439 = vmatpush1.bf16.msra.mxu0 0
        %440 = vmatprep.subr.bf16.mxu0 0
        %441 = vmatpush1.bf16.msra.mxu0 0
        %442 = vmatprep.subr.bf16.mxu0 0
        %443 = vmatpush1.bf16.msra.mxu0 0
        %444 = vmatprep.subr.bf16.mxu0 0
        %445 = vmatpush1.bf16.msra.mxu0 0
        %446 = vmatprep.subr.bf16.mxu0 0
        %447 = vmatpush1.bf16.msra.mxu0 0
        %448 = vmatprep.subr.bf16.mxu0 0
        %449 = vmatpush1.bf16.msra.mxu0 0
        %450 = vmatprep.subr.bf16.mxu0 0
        %451 = vmatpush1.bf16.msra.mxu0 0
        %452 = vmatprep.mubr.bf16.mxu0 0
        %453 = vmatmul.mubr.bf16.gmra.mrb[0].mxu0 %v352
        %v454 = vpop.f32.mrb[0].mxu0
        %v455 = vadd.f32 0.0, %v454
        %v456 = vpop.f32.mrb[0].mxu0
        %v457 = vpop.f32.mrb[0].mxu0
        %v458 = vadd.f32 0.0, %v457
        %v459 = vpop.f32.mrb[0].mxu0
        %460 = vmatprep.mubr.bf16.mxu0 0
        %461 = vmatmul.mubr.bf16.gmra.mrb[0].mxu0 %v353
        %v462 = vpop.f32.mrb[0].mxu0
        %v463 = vadd.f32 0.0, %v462
        %v464 = vpop.f32.mrb[0].mxu0
        %v465 = vpop.f32.mrb[0].mxu0
        %v466 = vadd.f32 0.0, %v465
        %v467 = vpop.f32.mrb[0].mxu0
        %468 = vmatprep.mubr.bf16.mxu0 0
        %469 = vmatmul.mubr.bf16.gmra.mrb[0].mxu0 %v354
        %v470 = vpop.f32.mrb[0].mxu0
        %v471 = vadd.f32 0.0, %v470
        %v472 = vpop.f32.mrb[0].mxu0
        %v473 = vpop.f32.mrb[0].mxu0
        %v474 = vadd.f32 0.0, %v473
        %v475 = vpop.f32.mrb[0].mxu0
        %476 = vmatprep.mubr.bf16.mxu0 0
        %477 = vmatmul.mubr.bf16.gmra.mrb[0].mxu0 %v355
        %v478 = vpop.f32.mrb[0].mxu0
        %v479 = vadd.f32 0.0, %v478
        %v480 = vpop.f32.mrb[0].mxu0
        %v481 = vpop.f32.mrb[0].mxu0
        %v482 = vadd.f32 0.0, %v481
        %v483 = vpop.f32.mrb[0].mxu0
        %484 = vdwg.mxu0
        %v485 = vpack.c.bf16 %v458, %v455
        %v486 = vpack.c.bf16 %v466, %v463
        %v487 = vpack.c.bf16 %v474, %v471
        %v488 = vpack.c.bf16 %v482, %v479
        %vm489 = vcmask 130048
        %v491 = vsel %vm489, %v348, 0
        %493 = vmatprep.subr.bf16.mxu0 0
        %494 = vmatpush1.bf16.msra.mxu0 %v485
        %495 = vmatprep.subr.bf16.mxu0 0
        %496 = vmatpush1.bf16.msra.mxu0 0
        %497 = vmatprep.subr.bf16.mxu0 0
        %498 = vmatpush1.bf16.msra.mxu0 0
        %499 = vmatprep.subr.bf16.mxu0 0
        %500 = vmatpush1.bf16.msra.mxu0 0
        %501 = vmatprep.subr.bf16.mxu0 0
        %502 = vmatpush1.bf16.msra.mxu0 0
        %503 = vmatprep.subr.bf16.mxu0 0
        %504 = vmatpush1.bf16.msra.mxu0 0
        %505 = vmatprep.subr.bf16.mxu0 0
        %506 = vmatpush1.bf16.msra.mxu0 0
        %507 = vmatprep.subr.bf16.mxu0 0
        %508 = vmatpush1.bf16.msra.mxu0 0
        %509 = vmatprep.subr.bf16.mxu0 0
        %510 = vmatpush1.bf16.msra.mxu0 0
        %511 = vmatprep.subr.bf16.mxu0 0
        %512 = vmatpush1.bf16.msra.mxu0 0
        %513 = vmatprep.subr.bf16.mxu0 0
        %514 = vmatpush1.bf16.msra.mxu0 0
        %515 = vmatprep.subr.bf16.mxu0 0
        %516 = vmatpush1.bf16.msra.mxu0 0
        %517 = vmatprep.subr.bf16.mxu0 0
        %518 = vmatpush1.bf16.msra.mxu0 0
        %519 = vmatprep.subr.bf16.mxu0 0
        %520 = vmatpush1.bf16.msra.mxu0 0
        %521 = vmatprep.subr.bf16.mxu0 0
        %522 = vmatpush1.bf16.msra.mxu0 0
        %523 = vmatprep.subr.bf16.mxu0 0
        %524 = vmatpush1.bf16.msra.mxu0 0
        %525 = vmatprep.mubr.bf16.mxu0 0
        %526 = vmatmul.mubr.bf16.gmra.mrb[0].mxu0 %v491
        %v527 = vpop.f32.mrb[0].mxu0
        %v528 = vadd.f32 0.0, %v527
        %v529 = vpop.f32.mrb[0].mxu0
        %v530 = vpop.f32.mrb[0].mxu0
        %v531 = vadd.f32 0.0, %v530
        %v532 = vpop.f32.mrb[0].mxu0
        %533 = vdwg.mxu0
        %v535 = vsel %vm489, %v349, 0
        %537 = vmatprep.subr.bf16.mxu0 0
        %538 = vmatpush1.bf16.msra.mxu0 %v486
        %539 = vmatprep.subr.bf16.mxu0 0
        %540 = vmatpush1.bf16.msra.mxu0 0
        %541 = vmatprep.subr.bf16.mxu0 0
        %542 = vmatpush1.bf16.msra.mxu0 0
        %543 = vmatprep.subr.bf16.mxu0 0
        %544 = vmatpush1.bf16.msra.mxu0 0
        %545 = vmatprep.subr.bf16.mxu0 0
        %546 = vmatpush1.bf16.msra.mxu0 0
        %547 = vmatprep.subr.bf16.mxu0 0
        %548 = vmatpush1.bf16.msra.mxu0 0
        %549 = vmatprep.subr.bf16.mxu0 0
        %550 = vmatpush1.bf16.msra.mxu0 0
        %551 = vmatprep.subr.bf16.mxu0 0
        %552 = vmatpush1.bf16.msra.mxu0 0
        %553 = vmatprep.subr.bf16.mxu0 0
        %554 = vmatpush1.bf16.msra.mxu0 0
        %555 = vmatprep.subr.bf16.mxu0 0
        %556 = vmatpush1.bf16.msra.mxu0 0
        %557 = vmatprep.subr.bf16.mxu0 0
        %558 = vmatpush1.bf16.msra.mxu0 0
        %559 = vmatprep.subr.bf16.mxu0 0
        %560 = vmatpush1.bf16.msra.mxu0 0
        %561 = vmatprep.subr.bf16.mxu0 0
        %562 = vmatpush1.bf16.msra.mxu0 0
        %563 = vmatprep.subr.bf16.mxu0 0
        %564 = vmatpush1.bf16.msra.mxu0 0
        %565 = vmatprep.subr.bf16.mxu0 0
        %566 = vmatpush1.bf16.msra.mxu0 0
        %567 = vmatprep.subr.bf16.mxu0 0
        %568 = vmatpush1.bf16.msra.mxu0 0
        %569 = vmatprep.mubr.bf16.mxu0 0
        %570 = vmatmul.mubr.bf16.gmra.mrb[0].mxu0 %v535
        %v571 = vpop.f32.mrb[0].mxu0
        %v572 = vadd.f32 0.0, %v571
        %v573 = vpop.f32.mrb[0].mxu0
        %v574 = vpop.f32.mrb[0].mxu0
        %v575 = vadd.f32 0.0, %v574
        %v576 = vpop.f32.mrb[0].mxu0
        %577 = vdwg.mxu0
        %v579 = vsel %vm489, %v350, 0
        %581 = vmatprep.subr.bf16.mxu0 0
        %582 = vmatpush1.bf16.msra.mxu0 %v487
        %583 = vmatprep.subr.bf16.mxu0 0
        %584 = vmatpush1.bf16.msra.mxu0 0
        %585 = vmatprep.subr.bf16.mxu0 0
        %586 = vmatpush1.bf16.msra.mxu0 0
        %587 = vmatprep.subr.bf16.mxu0 0
        %588 = vmatpush1.bf16.msra.mxu0 0
        %589 = vmatprep.subr.bf16.mxu0 0
        %590 = vmatpush1.bf16.msra.mxu0 0
        %591 = vmatprep.subr.bf16.mxu0 0
        %592 = vmatpush1.bf16.msra.mxu0 0
        %593 = vmatprep.subr.bf16.mxu0 0
        %594 = vmatpush1.bf16.msra.mxu0 0
        %595 = vmatprep.subr.bf16.mxu0 0
        %596 = vmatpush1.bf16.msra.mxu0 0
        %597 = vmatprep.subr.bf16.mxu0 0
        %598 = vmatpush1.bf16.msra.mxu0 0
        %599 = vmatprep.subr.bf16.mxu0 0
        %600 = vmatpush1.bf16.msra.mxu0 0
        %601 = vmatprep.subr.bf16.mxu0 0
        %602 = vmatpush1.bf16.msra.mxu0 0
        %603 = vmatprep.subr.bf16.mxu0 0
        %604 = vmatpush1.bf16.msra.mxu0 0
        %605 = vmatprep.subr.bf16.mxu0 0
        %606 = vmatpush1.bf16.msra.mxu0 0
        %607 = vmatprep.subr.bf16.mxu0 0
        %608 = vmatpush1.bf16.msra.mxu0 0
        %609 = vmatprep.subr.bf16.mxu0 0
        %610 = vmatpush1.bf16.msra.mxu0 0
        %611 = vmatprep.subr.bf16.mxu0 0
        %612 = vmatpush1.bf16.msra.mxu0 0
        %613 = vmatprep.mubr.bf16.mxu0 0
        %614 = vmatmul.mubr.bf16.gmra.mrb[0].mxu0 %v579
        %v615 = vpop.f32.mrb[0].mxu0
        %v616 = vadd.f32 0.0, %v615
        %v617 = vpop.f32.mrb[0].mxu0
        %v618 = vpop.f32.mrb[0].mxu0
        %v619 = vadd.f32 0.0, %v618
        %v620 = vpop.f32.mrb[0].mxu0
        %621 = vdwg.mxu0
        %v623 = vsel %vm489, %v351, 0
        %625 = vmatprep.subr.bf16.mxu0 0
        %626 = vmatpush1.bf16.msra.mxu0 %v488
        %627 = vmatprep.subr.bf16.mxu0 0
        %628 = vmatpush1.bf16.msra.mxu0 0
        %629 = vmatprep.subr.bf16.mxu0 0
        %630 = vmatpush1.bf16.msra.mxu0 0
        %631 = vmatprep.subr.bf16.mxu0 0
        %632 = vmatpush1.bf16.msra.mxu0 0
        %633 = vmatprep.subr.bf16.mxu0 0
        %634 = vmatpush1.bf16.msra.mxu0 0
        %635 = vmatprep.subr.bf16.mxu0 0
        %636 = vmatpush1.bf16.msra.mxu0 0
        %637 = vmatprep.subr.bf16.mxu0 0
        %638 = vmatpush1.bf16.msra.mxu0 0
        %639 = vmatprep.subr.bf16.mxu0 0
        %640 = vmatpush1.bf16.msra.mxu0 0
        %641 = vmatprep.subr.bf16.mxu0 0
        %642 = vmatpush1.bf16.msra.mxu0 0
        %643 = vmatprep.subr.bf16.mxu0 0
        %644 = vmatpush1.bf16.msra.mxu0 0
        %645 = vmatprep.subr.bf16.mxu0 0
        %646 = vmatpush1.bf16.msra.mxu0 0
        %647 = vmatprep.subr.bf16.mxu0 0
        %648 = vmatpush1.bf16.msra.mxu0 0
        %649 = vmatprep.subr.bf16.mxu0 0
        %650 = vmatpush1.bf16.msra.mxu0 0
        %651 = vmatprep.subr.bf16.mxu0 0
        %652 = vmatpush1.bf16.msra.mxu0 0
        %653 = vmatprep.subr.bf16.mxu0 0
        %654 = vmatpush1.bf16.msra.mxu0 0
        %655 = vmatprep.subr.bf16.mxu0 0
        %656 = vmatpush1.bf16.msra.mxu0 0
        %657 = vmatprep.mubr.bf16.mxu0 0
        %658 = vmatmul.mubr.bf16.gmra.mrb[0].mxu0 %v623
        %v659 = vpop.f32.mrb[0].mxu0
        %v660 = vadd.f32 0.0, %v659
        %v661 = vpop.f32.mrb[0].mxu0
        %v662 = vpop.f32.mrb[0].mxu0
        %v663 = vadd.f32 0.0, %v662
        %v664 = vpop.f32.mrb[0].mxu0
        %665 = vdwg.mxu0
        %v666 = vld [vmem:[%s3] sm:$0x1]
        %v668 = vlaneseq
        %v669 = vshrl.u32 %v668, 7
        %v670 = vsub.s32 0, %v669
        %v671 = vrot.slane %v666, %v670
        %v673 = vadd.f32 %v528, %v671
        %v674 = vadd.f32 %v531, %v671
        %v675 = vadd.f32 %v572, %v671
        %v676 = vadd.f32 %v575, %v671
        %v677 = vadd.f32 %v616, %v671
        %v678 = vadd.f32 %v619, %v671
        %v679 = vadd.f32 %v660, %v671
        %v680 = vadd.f32 %v663, %v671
        %v681 = vpack.c.bf16 %v674, %v673
        %v682 = vpack.c.bf16 %v676, %v675
        %v683 = vpack.c.bf16 %v678, %v677
        %v684 = vpack.c.bf16 %v680, %v679
        %s685 = scalar_lea.vmem [#allocation7], 64
        %v686 = vld [vmem:[%s685] sm:$0xf]
        %v687 = vld [vmem:[%s685 + $0x4] sm:$0xf]
        %v688 = vld [vmem:[%s685 + $0x8] sm:$0xf]
        %v689 = vld [vmem:[%s685 + $0xc] sm:$0xf]
        %v690 = vld [vmem:[%s685 + $0x10] sm:$0xf]
        %v691 = vld [vmem:[%s685 + $0x14] sm:$0xf]
        %v692 = vld [vmem:[%s685 + $0x18] sm:$0xf]
        %v693 = vld [vmem:[%s685 + $0x1c] sm:$0xf]
        %v694 = vld [vmem:[%s685 + $0x20] sm:$0xf]
        %v695 = vld [vmem:[%s685 + $0x24] sm:$0xf]
        %v696 = vld [vmem:[%s685 + $0x28] sm:$0xf]
        %v697 = vld [vmem:[%s685 + $0x2c] sm:$0xf]
        %v698 = vld [vmem:[%s685 + $0x30] sm:$0xf]
        %v699 = vld [vmem:[%s685 + $0x34] sm:$0xf]
        %v700 = vld [vmem:[%s685 + $0x38] sm:$0xf]
        %v701 = vld [vmem:[%s685 + $0x3c] sm:$0xf]
        %v718 = vunpack.c.l.b16 %v686
        %v719 = vunpack.c.l.b16 %v687
        %v720 = vunpack.c.l.b16 %v688
        %v721 = vunpack.c.l.b16 %v689
        %v722 = vunpack.c.l.b16 %v690
        %v723 = vunpack.c.l.b16 %v691
        %v724 = vunpack.c.l.b16 %v692
        %v725 = vunpack.c.l.b16 %v693
        %v726 = vunpack.c.l.b16 %v694
        %v727 = vunpack.c.l.b16 %v695
        %v728 = vunpack.c.l.b16 %v696
        %v729 = vunpack.c.l.b16 %v697
        %v730 = vunpack.c.l.b16 %v698
        %v731 = vunpack.c.l.b16 %v699
        %v732 = vunpack.c.l.b16 %v700
        %v733 = vunpack.c.l.b16 %v701
        %v734 = vpack.c.b16 %v719, %v718
        %v735 = vpack.c.b16 %v721, %v720
        %v736 = vpack.c.b16 %v723, %v722
        %v737 = vpack.c.b16 %v725, %v724
        %v738 = vpack.c.b16 %v727, %v726
        %v739 = vpack.c.b16 %v729, %v728
        %v740 = vpack.c.b16 %v731, %v730
        %v741 = vpack.c.b16 %v733, %v732
        %750 = vmatprep.subr.bf16.mxu0 0
        %751 = vmatpush1.bf16.msra.mxu0 %v734
        %752 = vmatprep.subr.bf16.mxu0 0
        %753 = vmatpush1.bf16.msra.mxu0 %v735
        %754 = vmatprep.subr.bf16.mxu0 0
        %755 = vmatpush1.bf16.msra.mxu0 %v736
        %756 = vmatprep.subr.bf16.mxu0 0
        %757 = vmatpush1.bf16.msra.mxu0 %v737
        %758 = vmatprep.subr.bf16.mxu0 0
        %759 = vmatpush1.bf16.msra.mxu0 %v738
        %760 = vmatprep.subr.bf16.mxu0 0
        %761 = vmatpush1.bf16.msra.mxu0 %v739
        %762 = vmatprep.subr.bf16.mxu0 0
        %763 = vmatpush1.bf16.msra.mxu0 %v740
        %764 = vmatprep.subr.bf16.mxu0 0
        %765 = vmatpush1.bf16.msra.mxu0 %v741
        %766 = vmatprep.subr.bf16.mxu0 0
        %767 = vmatpush1.bf16.msra.mxu0 0
        %768 = vmatprep.subr.bf16.mxu0 0
        %769 = vmatpush1.bf16.msra.mxu0 0
        %770 = vmatprep.subr.bf16.mxu0 0
        %771 = vmatpush1.bf16.msra.mxu0 0
        %772 = vmatprep.subr.bf16.mxu0 0
        %773 = vmatpush1.bf16.msra.mxu0 0
        %774 = vmatprep.subr.bf16.mxu0 0
        %775 = vmatpush1.bf16.msra.mxu0 0
        %776 = vmatprep.subr.bf16.mxu0 0
        %777 = vmatpush1.bf16.msra.mxu0 0
        %778 = vmatprep.subr.bf16.mxu0 0
        %779 = vmatpush1.bf16.msra.mxu0 0
        %780 = vmatprep.subr.bf16.mxu0 0
        %781 = vmatpush1.bf16.msra.mxu0 0
        %782 = vmatprep.mubr.bf16.mxu0 0
        %783 = vmatmul.mubr.bf16.gmra.mrb[0].mxu0 %v681
        %v784 = vpop.f32.mrb[0].mxu0
        %v785 = vadd.f32 0.0, %v784
        %v786 = vpop.f32.mrb[0].mxu0
        %v787 = vpop.f32.mrb[0].mxu0
        %v788 = vadd.f32 0.0, %v787
        %v789 = vpop.f32.mrb[0].mxu0
        %790 = vmatprep.mubr.bf16.mxu0 0
        %791 = vmatmul.mubr.bf16.gmra.mrb[0].mxu0 %v682
        %v792 = vpop.f32.mrb[0].mxu0
        %v793 = vadd.f32 0.0, %v792
        %v794 = vpop.f32.mrb[0].mxu0
        %v795 = vpop.f32.mrb[0].mxu0
        %v796 = vadd.f32 0.0, %v795
        %v797 = vpop.f32.mrb[0].mxu0
        %798 = vmatprep.mubr.bf16.mxu0 0
        %799 = vmatmul.mubr.bf16.gmra.mrb[0].mxu0 %v683
        %v800 = vpop.f32.mrb[0].mxu0
        %v801 = vadd.f32 0.0, %v800
        %v802 = vpop.f32.mrb[0].mxu0
        %v803 = vpop.f32.mrb[0].mxu0
        %v804 = vadd.f32 0.0, %v803
        %v805 = vpop.f32.mrb[0].mxu0
        %806 = vmatprep.mubr.bf16.mxu0 0
        %807 = vmatmul.mubr.bf16.gmra.mrb[0].mxu0 %v684
        %v808 = vpop.f32.mrb[0].mxu0
        %v809 = vadd.f32 0.0, %v808
        %v810 = vpop.f32.mrb[0].mxu0
        %v811 = vpop.f32.mrb[0].mxu0
        %v812 = vadd.f32 0.0, %v811
        %v813 = vpop.f32.mrb[0].mxu0
        %814 = vdwg.mxu0
        %v815 = vpack.c.bf16 %v788, %v785
        %v816 = vpack.c.bf16 %v796, %v793
        %v817 = vpack.c.bf16 %v804, %v801
        %v818 = vpack.c.bf16 %v812, %v809
        %819 = vmatprep.subr.bf16.mxu0 0
        %820 = vmatpush1.bf16.msra.mxu0 %v815
        %821 = vmatprep.subr.bf16.mxu0 0
        %822 = vmatpush1.bf16.msra.mxu0 0
        %823 = vmatprep.subr.bf16.mxu0 0
        %824 = vmatpush1.bf16.msra.mxu0 0
        %825 = vmatprep.subr.bf16.mxu0 0
        %826 = vmatpush1.bf16.msra.mxu0 0
        %827 = vmatprep.subr.bf16.mxu0 0
        %828 = vmatpush1.bf16.msra.mxu0 0
        %829 = vmatprep.subr.bf16.mxu0 0
        %830 = vmatpush1.bf16.msra.mxu0 0
        %831 = vmatprep.subr.bf16.mxu0 0
        %832 = vmatpush1.bf16.msra.mxu0 0
        %833 = vmatprep.subr.bf16.mxu0 0
        %834 = vmatpush1.bf16.msra.mxu0 0
        %835 = vmatprep.subr.bf16.mxu0 0
        %836 = vmatpush1.bf16.msra.mxu0 0
        %837 = vmatprep.subr.bf16.mxu0 0
        %838 = vmatpush1.bf16.msra.mxu0 0
        %839 = vmatprep.subr.bf16.mxu0 0
        %840 = vmatpush1.bf16.msra.mxu0 0
        %841 = vmatprep.subr.bf16.mxu0 0
        %842 = vmatpush1.bf16.msra.mxu0 0
        %843 = vmatprep.subr.bf16.mxu0 0
        %844 = vmatpush1.bf16.msra.mxu0 0
        %845 = vmatprep.subr.bf16.mxu0 0
        %846 = vmatpush1.bf16.msra.mxu0 0
        %847 = vmatprep.subr.bf16.mxu0 0
        %848 = vmatpush1.bf16.msra.mxu0 0
        %849 = vmatprep.subr.bf16.mxu0 0
        %850 = vmatpush1.bf16.msra.mxu0 0
        %851 = vmatprep.mubr.bf16.mxu0 0
        %852 = vmatmul.mubr.bf16.gmra.mrb[0].mxu0 %v491
        %v853 = vpop.f32.mrb[0].mxu0
        %v854 = vadd.f32 0.0, %v853
        %v855 = vpop.f32.mrb[0].mxu0
        %v856 = vpop.f32.mrb[0].mxu0
        %v857 = vadd.f32 0.0, %v856
        %v858 = vpop.f32.mrb[0].mxu0
        %859 = vdwg.mxu0
        %860 = vmatprep.subr.bf16.mxu0 0
        %861 = vmatpush1.bf16.msra.mxu0 %v816
        %862 = vmatprep.subr.bf16.mxu0 0
        %863 = vmatpush1.bf16.msra.mxu0 0
        %864 = vmatprep.subr.bf16.mxu0 0
        %865 = vmatpush1.bf16.msra.mxu0 0
        %866 = vmatprep.subr.bf16.mxu0 0
        %867 = vmatpush1.bf16.msra.mxu0 0
        %868 = vmatprep.subr.bf16.mxu0 0
        %869 = vmatpush1.bf16.msra.mxu0 0
        %870 = vmatprep.subr.bf16.mxu0 0
        %871 = vmatpush1.bf16.msra.mxu0 0
        %872 = vmatprep.subr.bf16.mxu0 0
        %873 = vmatpush1.bf16.msra.mxu0 0
        %874 = vmatprep.subr.bf16.mxu0 0
        %875 = vmatpush1.bf16.msra.mxu0 0
        %876 = vmatprep.subr.bf16.mxu0 0
        %877 = vmatpush1.bf16.msra.mxu0 0
        %878 = vmatprep.subr.bf16.mxu0 0
        %879 = vmatpush1.bf16.msra.mxu0 0
        %880 = vmatprep.subr.bf16.mxu0 0
        %881 = vmatpush1.bf16.msra.mxu0 0
        %882 = vmatprep.subr.bf16.mxu0 0
        %883 = vmatpush1.bf16.msra.mxu0 0
        %884 = vmatprep.subr.bf16.mxu0 0
        %885 = vmatpush1.bf16.msra.mxu0 0
        %886 = vmatprep.subr.bf16.mxu0 0
        %887 = vmatpush1.bf16.msra.mxu0 0
        %888 = vmatprep.subr.bf16.mxu0 0
        %889 = vmatpush1.bf16.msra.mxu0 0
        %890 = vmatprep.subr.bf16.mxu0 0
        %891 = vmatpush1.bf16.msra.mxu0 0
        %892 = vmatprep.mubr.bf16.mxu0 0
        %893 = vmatmul.mubr.bf16.gmra.mrb[0].mxu0 %v535
        %v894 = vpop.f32.mrb[0].mxu0
        %v895 = vadd.f32 0.0, %v894
        %v896 = vpop.f32.mrb[0].mxu0
        %v897 = vpop.f32.mrb[0].mxu0
        %v898 = vadd.f32 0.0, %v897
        %v899 = vpop.f32.mrb[0].mxu0
        %900 = vdwg.mxu0
        %901 = vmatprep.subr.bf16.mxu0 0
        %902 = vmatpush1.bf16.msra.mxu0 %v817
        %903 = vmatprep.subr.bf16.mxu0 0
        %904 = vmatpush1.bf16.msra.mxu0 0
        %905 = vmatprep.subr.bf16.mxu0 0
        %906 = vmatpush1.bf16.msra.mxu0 0
        %907 = vmatprep.subr.bf16.mxu0 0
        %908 = vmatpush1.bf16.msra.mxu0 0
        %909 = vmatprep.subr.bf16.mxu0 0
        %910 = vmatpush1.bf16.msra.mxu0 0
        %911 = vmatprep.subr.bf16.mxu0 0
        %912 = vmatpush1.bf16.msra.mxu0 0
        %913 = vmatprep.subr.bf16.mxu0 0
        %914 = vmatpush1.bf16.msra.mxu0 0
        %915 = vmatprep.subr.bf16.mxu0 0
        %916 = vmatpush1.bf16.msra.mxu0 0
        %917 = vmatprep.subr.bf16.mxu0 0
        %918 = vmatpush1.bf16.msra.mxu0 0
        %919 = vmatprep.subr.bf16.mxu0 0
        %920 = vmatpush1.bf16.msra.mxu0 0
        %921 = vmatprep.subr.bf16.mxu0 0
        %922 = vmatpush1.bf16.msra.mxu0 0
        %923 = vmatprep.subr.bf16.mxu0 0
        %924 = vmatpush1.bf16.msra.mxu0 0
        %925 = vmatprep.subr.bf16.mxu0 0
        %926 = vmatpush1.bf16.msra.mxu0 0
        %927 = vmatprep.subr.bf16.mxu0 0
        %928 = vmatpush1.bf16.msra.mxu0 0
        %929 = vmatprep.subr.bf16.mxu0 0
        %930 = vmatpush1.bf16.msra.mxu0 0
        %931 = vmatprep.subr.bf16.mxu0 0
        %932 = vmatpush1.bf16.msra.mxu0 0
        %933 = vmatprep.mubr.bf16.mxu0 0
        %934 = vmatmul.mubr.bf16.gmra.mrb[0].mxu0 %v579
        %v935 = vpop.f32.mrb[0].mxu0
        %v936 = vadd.f32 0.0, %v935
        %v937 = vpop.f32.mrb[0].mxu0
        %v938 = vpop.f32.mrb[0].mxu0
        %v939 = vadd.f32 0.0, %v938
        %v940 = vpop.f32.mrb[0].mxu0
        %941 = vdwg.mxu0
        %942 = vmatprep.subr.bf16.mxu0 0
        %943 = vmatpush1.bf16.msra.mxu0 %v818
        %944 = vmatprep.subr.bf16.mxu0 0
        %945 = vmatpush1.bf16.msra.mxu0 0
        %946 = vmatprep.subr.bf16.mxu0 0
        %947 = vmatpush1.bf16.msra.mxu0 0
        %948 = vmatprep.subr.bf16.mxu0 0
        %949 = vmatpush1.bf16.msra.mxu0 0
        %950 = vmatprep.subr.bf16.mxu0 0
        %951 = vmatpush1.bf16.msra.mxu0 0
        %952 = vmatprep.subr.bf16.mxu0 0
        %953 = vmatpush1.bf16.msra.mxu0 0
        %954 = vmatprep.subr.bf16.mxu0 0
        %955 = vmatpush1.bf16.msra.mxu0 0
        %956 = vmatprep.subr.bf16.mxu0 0
        %957 = vmatpush1.bf16.msra.mxu0 0
        %958 = vmatprep.subr.bf16.mxu0 0
        %959 = vmatpush1.bf16.msra.mxu0 0
        %960 = vmatprep.subr.bf16.mxu0 0
        %961 = vmatpush1.bf16.msra.mxu0 0
        %962 = vmatprep.subr.bf16.mxu0 0
        %963 = vmatpush1.bf16.msra.mxu0 0
        %964 = vmatprep.subr.bf16.mxu0 0
        %965 = vmatpush1.bf16.msra.mxu0 0
        %966 = vmatprep.subr.bf16.mxu0 0
        %967 = vmatpush1.bf16.msra.mxu0 0
        %968 = vmatprep.subr.bf16.mxu0 0
        %969 = vmatpush1.bf16.msra.mxu0 0
        %970 = vmatprep.subr.bf16.mxu0 0
        %971 = vmatpush1.bf16.msra.mxu0 0
        %972 = vmatprep.subr.bf16.mxu0 0
        %973 = vmatpush1.bf16.msra.mxu0 0
        %974 = vmatprep.mubr.bf16.mxu0 0
        %975 = vmatmul.mubr.bf16.gmra.mrb[0].mxu0 %v623
        %v976 = vpop.f32.mrb[0].mxu0
        %v977 = vadd.f32 0.0, %v976
        %v978 = vpop.f32.mrb[0].mxu0
        %v979 = vpop.f32.mrb[0].mxu0
        %v980 = vadd.f32 0.0, %v979
        %v981 = vpop.f32.mrb[0].mxu0
        %982 = vdwg.mxu0
        %s983 = scalar_lea.vmem %s3, 1
        %v984 = vld [vmem:[%s983] sm:$0x1]
        %v986 = vlaneseq
        %v987 = vshrl.u32 %v986, 7
        %v988 = vsub.s32 0, %v987
        %v989 = vrot.slane %v984, %v988
        %v991 = vadd.f32 %v854, %v989
        %v992 = vadd.f32 %v857, %v989
        %v993 = vadd.f32 %v895, %v989
        %v994 = vadd.f32 %v898, %v989
        %v995 = vadd.f32 %v936, %v989
        %v996 = vadd.f32 %v939, %v989
        %v997 = vadd.f32 %v977, %v989
        %v998 = vadd.f32 %v980, %v989
        %v999 = vpack.c.bf16 %v992, %v991
        %v1000 = vpack.c.bf16 %v994, %v993
        %v1001 = vpack.c.bf16 %v996, %v995
        %v1002 = vpack.c.bf16 %v998, %v997
        %s1003 = scalar_lea.vmem [#allocation7], 128
        %v1004 = vld [vmem:[%s1003] sm:$0xf]
        %v1005 = vld [vmem:[%s1003 + $0x4] sm:$0xf]
        %v1006 = vld [vmem:[%s1003 + $0x8] sm:$0xf]
        %v1007 = vld [vmem:[%s1003 + $0xc] sm:$0xf]
        %v1008 = vld [vmem:[%s1003 + $0x10] sm:$0xf]
        %v1009 = vld [vmem:[%s1003 + $0x14] sm:$0xf]
        %v1010 = vld [vmem:[%s1003 + $0x18] sm:$0xf]
        %v1011 = vld [vmem:[%s1003 + $0x1c] sm:$0xf]
        %v1012 = vld [vmem:[%s1003 + $0x20] sm:$0xf]
        %v1013 = vld [vmem:[%s1003 + $0x24] sm:$0xf]
        %v1014 = vld [vmem:[%s1003 + $0x28] sm:$0xf]
        %v1015 = vld [vmem:[%s1003 + $0x2c] sm:$0xf]
        %v1016 = vld [vmem:[%s1003 + $0x30] sm:$0xf]
        %v1017 = vld [vmem:[%s1003 + $0x34] sm:$0xf]
        %v1018 = vld [vmem:[%s1003 + $0x38] sm:$0xf]
        %v1019 = vld [vmem:[%s1003 + $0x3c] sm:$0xf]
        %v1036 = vunpack.c.l.b16 %v1004
        %v1037 = vunpack.c.l.b16 %v1005
        %v1038 = vunpack.c.l.b16 %v1006
        %v1039 = vunpack.c.l.b16 %v1007
        %v1040 = vunpack.c.l.b16 %v1008
        %v1041 = vunpack.c.l.b16 %v1009
        %v1042 = vunpack.c.l.b16 %v1010
        %v1043 = vunpack.c.l.b16 %v1011
        %v1044 = vunpack.c.l.b16 %v1012
        %v1045 = vunpack.c.l.b16 %v1013
        %v1046 = vunpack.c.l.b16 %v1014
        %v1047 = vunpack.c.l.b16 %v1015
        %v1048 = vunpack.c.l.b16 %v1016
        %v1049 = vunpack.c.l.b16 %v1017
        %v1050 = vunpack.c.l.b16 %v1018
        %v1051 = vunpack.c.l.b16 %v1019
        %v1052 = vpack.c.b16 %v1037, %v1036
        %v1053 = vpack.c.b16 %v1039, %v1038
        %v1054 = vpack.c.b16 %v1041, %v1040
        %v1055 = vpack.c.b16 %v1043, %v1042
        %v1056 = vpack.c.b16 %v1045, %v1044
        %v1057 = vpack.c.b16 %v1047, %v1046
        %v1058 = vpack.c.b16 %v1049, %v1048
        %v1059 = vpack.c.b16 %v1051, %v1050
        %1068 = vmatprep.subr.bf16.mxu0 0
        %1069 = vmatpush1.bf16.msra.mxu0 %v1052
        %1070 = vmatprep.subr.bf16.mxu0 0
        %1071 = vmatpush1.bf16.msra.mxu0 %v1053
        %1072 = vmatprep.subr.bf16.mxu0 0
        %1073 = vmatpush1.bf16.msra.mxu0 %v1054
        %1074 = vmatprep.subr.bf16.mxu0 0
        %1075 = vmatpush1.bf16.msra.mxu0 %v1055
        %1076 = vmatprep.subr.bf16.mxu0 0
        %1077 = vmatpush1.bf16.msra.mxu0 %v1056
        %1078 = vmatprep.subr.bf16.mxu0 0
        %1079 = vmatpush1.bf16.msra.mxu0 %v1057
        %1080 = vmatprep.subr.bf16.mxu0 0
        %1081 = vmatpush1.bf16.msra.mxu0 %v1058
        %1082 = vmatprep.subr.bf16.mxu0 0
        %1083 = vmatpush1.bf16.msra.mxu0 %v1059
        %1084 = vmatprep.subr.bf16.mxu0 0
        %1085 = vmatpush1.bf16.msra.mxu0 0
        %1086 = vmatprep.subr.bf16.mxu0 0
        %1087 = vmatpush1.bf16.msra.mxu0 0
        %1088 = vmatprep.subr.bf16.mxu0 0
        %1089 = vmatpush1.bf16.msra.mxu0 0
        %1090 = vmatprep.subr.bf16.mxu0 0
        %1091 = vmatpush1.bf16.msra.mxu0 0
        %1092 = vmatprep.subr.bf16.mxu0 0
        %1093 = vmatpush1.bf16.msra.mxu0 0
        %1094 = vmatprep.subr.bf16.mxu0 0
        %1095 = vmatpush1.bf16.msra.mxu0 0
        %1096 = vmatprep.subr.bf16.mxu0 0
        %1097 = vmatpush1.bf16.msra.mxu0 0
        %1098 = vmatprep.subr.bf16.mxu0 0
        %1099 = vmatpush1.bf16.msra.mxu0 0
        %1100 = vmatprep.mubr.bf16.mxu0 0
        %1101 = vmatmul.mubr.bf16.gmra.mrb[0].mxu0 %v999
        %v1102 = vpop.f32.mrb[0].mxu0
        %v1103 = vadd.f32 0.0, %v1102
        %v1104 = vpop.f32.mrb[0].mxu0
        %v1105 = vpop.f32.mrb[0].mxu0
        %v1106 = vadd.f32 0.0, %v1105
        %v1107 = vpop.f32.mrb[0].mxu0
        %1108 = vmatprep.mubr.bf16.mxu0 0
        %1109 = vmatmul.mubr.bf16.gmra.mrb[0].mxu0 %v1000
        %v1110 = vpop.f32.mrb[0].mxu0
        %v1111 = vadd.f32 0.0, %v1110
        %v1112 = vpop.f32.mrb[0].mxu0
        %v1113 = vpop.f32.mrb[0].mxu0
        %v1114 = vadd.f32 0.0, %v1113
        %v1115 = vpop.f32.mrb[0].mxu0
        %1116 = vmatprep.mubr.bf16.mxu0 0
        %1117 = vmatmul.mubr.bf16.gmra.mrb[0].mxu0 %v1001
        %v1118 = vpop.f32.mrb[0].mxu0
        %v1119 = vadd.f32 0.0, %v1118
        %v1120 = vpop.f32.mrb[0].mxu0
        %v1121 = vpop.f32.mrb[0].mxu0
        %v1122 = vadd.f32 0.0, %v1121
        %v1123 = vpop.f32.mrb[0].mxu0
        %1124 = vmatprep.mubr.bf16.mxu0 0
        %1125 = vmatmul.mubr.bf16.gmra.mrb[0].mxu0 %v1002
        %v1126 = vpop.f32.mrb[0].mxu0
        %v1127 = vadd.f32 0.0, %v1126
        %v1128 = vpop.f32.mrb[0].mxu0
        %v1129 = vpop.f32.mrb[0].mxu0
        %v1130 = vadd.f32 0.0, %v1129
        %v1131 = vpop.f32.mrb[0].mxu0
        %1132 = vdwg.mxu0
        %v1133 = vpack.c.bf16 %v1106, %v1103
        %v1134 = vpack.c.bf16 %v1114, %v1111
        %v1135 = vpack.c.bf16 %v1122, %v1119
        %v1136 = vpack.c.bf16 %v1130, %v1127
        %1137 = vmatprep.subr.bf16.mxu0 0
        %1138 = vmatpush1.bf16.msra.mxu0 %v1133
        %1139 = vmatprep.subr.bf16.mxu0 0
        %1140 = vmatpush1.bf16.msra.mxu0 0
        %1141 = vmatprep.subr.bf16.mxu0 0
        %1142 = vmatpush1.bf16.msra.mxu0 0
        %1143 = vmatprep.subr.bf16.mxu0 0
        %1144 = vmatpush1.bf16.msra.mxu0 0
        %1145 = vmatprep.subr.bf16.mxu0 0
        %1146 = vmatpush1.bf16.msra.mxu0 0
        %1147 = vmatprep.subr.bf16.mxu0 0
        %1148 = vmatpush1.bf16.msra.mxu0 0
        %1149 = vmatprep.subr.bf16.mxu0 0
        %1150 = vmatpush1.bf16.msra.mxu0 0
        %1151 = vmatprep.subr.bf16.mxu0 0
        %1152 = vmatpush1.bf16.msra.mxu0 0
        %1153 = vmatprep.subr.bf16.mxu0 0
        %1154 = vmatpush1.bf16.msra.mxu0 0
        %1155 = vmatprep.subr.bf16.mxu0 0
        %1156 = vmatpush1.bf16.msra.mxu0 0
        %1157 = vmatprep.subr.bf16.mxu0 0
        %1158 = vmatpush1.bf16.msra.mxu0 0
        %1159 = vmatprep.subr.bf16.mxu0 0
        %1160 = vmatpush1.bf16.msra.mxu0 0
        %1161 = vmatprep.subr.bf16.mxu0 0
        %1162 = vmatpush1.bf16.msra.mxu0 0
        %1163 = vmatprep.subr.bf16.mxu0 0
        %1164 = vmatpush1.bf16.msra.mxu0 0
        %1165 = vmatprep.subr.bf16.mxu0 0
        %1166 = vmatpush1.bf16.msra.mxu0 0
        %1167 = vmatprep.subr.bf16.mxu0 0
        %1168 = vmatpush1.bf16.msra.mxu0 0
        %1169 = vmatprep.mubr.bf16.mxu0 0
        %1170 = vmatmul.mubr.bf16.gmra.mrb[0].mxu0 %v491
        %v1171 = vpop.f32.mrb[0].mxu0
        %v1172 = vadd.f32 0.0, %v1171
        %v1173 = vpop.f32.mrb[0].mxu0
        %v1174 = vpop.f32.mrb[0].mxu0
        %v1175 = vadd.f32 0.0, %v1174
        %v1176 = vpop.f32.mrb[0].mxu0
        %1177 = vdwg.mxu0
        %1178 = vmatprep.subr.bf16.mxu0 0
        %1179 = vmatpush1.bf16.msra.mxu0 %v1134
        %1180 = vmatprep.subr.bf16.mxu0 0
        %1181 = vmatpush1.bf16.msra.mxu0 0
        %1182 = vmatprep.subr.bf16.mxu0 0
        %1183 = vmatpush1.bf16.msra.mxu0 0
        %1184 = vmatprep.subr.bf16.mxu0 0
        %1185 = vmatpush1.bf16.msra.mxu0 0
        %1186 = vmatprep.subr.bf16.mxu0 0
        %1187 = vmatpush1.bf16.msra.mxu0 0
        %1188 = vmatprep.subr.bf16.mxu0 0
        %1189 = vmatpush1.bf16.msra.mxu0 0
        %1190 = vmatprep.subr.bf16.mxu0 0
        %1191 = vmatpush1.bf16.msra.mxu0 0
        %1192 = vmatprep.subr.bf16.mxu0 0
        %1193 = vmatpush1.bf16.msra.mxu0 0
        %1194 = vmatprep.subr.bf16.mxu0 0
        %1195 = vmatpush1.bf16.msra.mxu0 0
        %1196 = vmatprep.subr.bf16.mxu0 0
        %1197 = vmatpush1.bf16.msra.mxu0 0
        %1198 = vmatprep.subr.bf16.mxu0 0
        %1199 = vmatpush1.bf16.msra.mxu0 0
        %1200 = vmatprep.subr.bf16.mxu0 0
        %1201 = vmatpush1.bf16.msra.mxu0 0
        %1202 = vmatprep.subr.bf16.mxu0 0
        %1203 = vmatpush1.bf16.msra.mxu0 0
        %1204 = vmatprep.subr.bf16.mxu0 0
        %1205 = vmatpush1.bf16.msra.mxu0 0
        %1206 = vmatprep.subr.bf16.mxu0 0
        %1207 = vmatpush1.bf16.msra.mxu0 0
        %1208 = vmatprep.subr.bf16.mxu0 0
        %1209 = vmatpush1.bf16.msra.mxu0 0
        %1210 = vmatprep.mubr.bf16.mxu0 0
        %1211 = vmatmul.mubr.bf16.gmra.mrb[0].mxu0 %v535
        %v1212 = vpop.f32.mrb[0].mxu0
        %v1213 = vadd.f32 0.0, %v1212
        %v1214 = vpop.f32.mrb[0].mxu0
        %v1215 = vpop.f32.mrb[0].mxu0
        %v1216 = vadd.f32 0.0, %v1215
        %v1217 = vpop.f32.mrb[0].mxu0
        %1218 = vdwg.mxu0
        %1219 = vmatprep.subr.bf16.mxu0 0
        %1220 = vmatpush1.bf16.msra.mxu0 %v1135
        %1221 = vmatprep.subr.bf16.mxu0 0
        %1222 = vmatpush1.bf16.msra.mxu0 0
        %1223 = vmatprep.subr.bf16.mxu0 0
        %1224 = vmatpush1.bf16.msra.mxu0 0
        %1225 = vmatprep.subr.bf16.mxu0 0
        %1226 = vmatpush1.bf16.msra.mxu0 0
        %1227 = vmatprep.subr.bf16.mxu0 0
        %1228 = vmatpush1.bf16.msra.mxu0 0
        %1229 = vmatprep.subr.bf16.mxu0 0
        %1230 = vmatpush1.bf16.msra.mxu0 0
        %1231 = vmatprep.subr.bf16.mxu0 0
        %1232 = vmatpush1.bf16.msra.mxu0 0
        %1233 = vmatprep.subr.bf16.mxu0 0
        %1234 = vmatpush1.bf16.msra.mxu0 0
        %1235 = vmatprep.subr.bf16.mxu0 0
        %1236 = vmatpush1.bf16.msra.mxu0 0
        %1237 = vmatprep.subr.bf16.mxu0 0
        %1238 = vmatpush1.bf16.msra.mxu0 0
        %1239 = vmatprep.subr.bf16.mxu0 0
        %1240 = vmatpush1.bf16.msra.mxu0 0
        %1241 = vmatprep.subr.bf16.mxu0 0
        %1242 = vmatpush1.bf16.msra.mxu0 0
        %1243 = vmatprep.subr.bf16.mxu0 0
        %1244 = vmatpush1.bf16.msra.mxu0 0
        %1245 = vmatprep.subr.bf16.mxu0 0
        %1246 = vmatpush1.bf16.msra.mxu0 0
        %1247 = vmatprep.subr.bf16.mxu0 0
        %1248 = vmatpush1.bf16.msra.mxu0 0
        %1249 = vmatprep.subr.bf16.mxu0 0
        %1250 = vmatpush1.bf16.msra.mxu0 0
        %1251 = vmatprep.mubr.bf16.mxu0 0
        %1252 = vmatmul.mubr.bf16.gmra.mrb[0].mxu0 %v579
        %v1253 = vpop.f32.mrb[0].mxu0
        %v1254 = vadd.f32 0.0, %v1253
        %v1255 = vpop.f32.mrb[0].mxu0
        %v1256 = vpop.f32.mrb[0].mxu0
        %v1257 = vadd.f32 0.0, %v1256
        %v1258 = vpop.f32.mrb[0].mxu0
        %1259 = vdwg.mxu0
        %1260 = vmatprep.subr.bf16.mxu0 0
        %1261 = vmatpush1.bf16.msra.mxu0 %v1136
        %1262 = vmatprep.subr.bf16.mxu0 0
        %1263 = vmatpush1.bf16.msra.mxu0 0
        %1264 = vmatprep.subr.bf16.mxu0 0
        %1265 = vmatpush1.bf16.msra.mxu0 0
        %1266 = vmatprep.subr.bf16.mxu0 0
        %1267 = vmatpush1.bf16.msra.mxu0 0
        %1268 = vmatprep.subr.bf16.mxu0 0
        %1269 = vmatpush1.bf16.msra.mxu0 0
        %1270 = vmatprep.subr.bf16.mxu0 0
        %1271 = vmatpush1.bf16.msra.mxu0 0
        %1272 = vmatprep.subr.bf16.mxu0 0
        %1273 = vmatpush1.bf16.msra.mxu0 0
        %1274 = vmatprep.subr.bf16.mxu0 0
        %1275 = vmatpush1.bf16.msra.mxu0 0
        %1276 = vmatprep.subr.bf16.mxu0 0
        %1277 = vmatpush1.bf16.msra.mxu0 0
        %1278 = vmatprep.subr.bf16.mxu0 0
        %1279 = vmatpush1.bf16.msra.mxu0 0
        %1280 = vmatprep.subr.bf16.mxu0 0
        %1281 = vmatpush1.bf16.msra.mxu0 0
        %1282 = vmatprep.subr.bf16.mxu0 0
        %1283 = vmatpush1.bf16.msra.mxu0 0
        %1284 = vmatprep.subr.bf16.mxu0 0
        %1285 = vmatpush1.bf16.msra.mxu0 0
        %1286 = vmatprep.subr.bf16.mxu0 0
        %1287 = vmatpush1.bf16.msra.mxu0 0
        %1288 = vmatprep.subr.bf16.mxu0 0
        %1289 = vmatpush1.bf16.msra.mxu0 0
        %1290 = vmatprep.subr.bf16.mxu0 0
        %1291 = vmatpush1.bf16.msra.mxu0 0
        %1292 = vmatprep.mubr.bf16.mxu0 0
        %1293 = vmatmul.mubr.bf16.gmra.mrb[0].mxu0 %v623
        %v1294 = vpop.f32.mrb[0].mxu0
        %v1295 = vadd.f32 0.0, %v1294
        %v1296 = vpop.f32.mrb[0].mxu0
        %v1297 = vpop.f32.mrb[0].mxu0
        %v1298 = vadd.f32 0.0, %v1297
        %v1299 = vpop.f32.mrb[0].mxu0
        %1300 = vdwg.mxu0
        %s1301 = scalar_lea.vmem %s3, 2
        %v1302 = vld [vmem:[%s1301] sm:$0x1]
        %v1304 = vlaneseq
        %v1305 = vshrl.u32 %v1304, 7
        %v1306 = vsub.s32 0, %v1305
        %v1307 = vrot.slane %v1302, %v1306
        %v1309 = vadd.f32 %v1172, %v1307
        %v1310 = vadd.f32 %v1175, %v1307
        %v1311 = vadd.f32 %v1213, %v1307
        %v1312 = vadd.f32 %v1216, %v1307
        %v1313 = vadd.f32 %v1254, %v1307
        %v1314 = vadd.f32 %v1257, %v1307
        %v1315 = vadd.f32 %v1295, %v1307
        %v1316 = vadd.f32 %v1298, %v1307
        %v1317 = vpack.c.bf16 %v1310, %v1309
        %v1318 = vpack.c.bf16 %v1312, %v1311
        %v1319 = vpack.c.bf16 %v1314, %v1313
        %v1320 = vpack.c.bf16 %v1316, %v1315
        %s1321 = scalar_lea.vmem [#allocation7], 192
        %v1322 = vld [vmem:[%s1321] sm:$0xf]
        %v1323 = vld [vmem:[%s1321 + $0x4] sm:$0xf]
        %v1324 = vld [vmem:[%s1321 + $0x8] sm:$0xf]
        %v1325 = vld [vmem:[%s1321 + $0xc] sm:$0xf]
        %v1326 = vld [vmem:[%s1321 + $0x10] sm:$0xf]
        %v1327 = vld [vmem:[%s1321 + $0x14] sm:$0xf]
        %v1328 = vld [vmem:[%s1321 + $0x18] sm:$0xf]
        %v1329 = vld [vmem:[%s1321 + $0x1c] sm:$0xf]
        %v1330 = vld [vmem:[%s1321 + $0x20] sm:$0xf]
        %v1331 = vld [vmem:[%s1321 + $0x24] sm:$0xf]
        %v1332 = vld [vmem:[%s1321 + $0x28] sm:$0xf]
        %v1333 = vld [vmem:[%s1321 + $0x2c] sm:$0xf]
        %v1334 = vld [vmem:[%s1321 + $0x30] sm:$0xf]
        %v1335 = vld [vmem:[%s1321 + $0x34] sm:$0xf]
        %v1336 = vld [vmem:[%s1321 + $0x38] sm:$0xf]
        %v1337 = vld [vmem:[%s1321 + $0x3c] sm:$0xf]
        %s1338 = scalar_lea.vmem %s3, 3
        %v1339 = vld [vmem:[%s1338] sm:$0x1]
        %v1341 = vlaneseq
        %v1342 = vshrl.u32 %v1341, 7
        %v1343 = vsub.s32 0, %v1342
        %v1344 = vrot.slane %v1339, %v1343
        %v1362 = vunpack.c.l.b16 %v1322
        %v1363 = vunpack.c.l.b16 %v1323
        %v1364 = vunpack.c.l.b16 %v1324
        %v1365 = vunpack.c.l.b16 %v1325
        %v1366 = vunpack.c.l.b16 %v1326
        %v1367 = vunpack.c.l.b16 %v1327
        %v1368 = vunpack.c.l.b16 %v1328
        %v1369 = vunpack.c.l.b16 %v1329
        %v1370 = vunpack.c.l.b16 %v1330
        %v1371 = vunpack.c.l.b16 %v1331
        %v1372 = vunpack.c.l.b16 %v1332
        %v1373 = vunpack.c.l.b16 %v1333
        %v1374 = vunpack.c.l.b16 %v1334
        %v1375 = vunpack.c.l.b16 %v1335
        %v1376 = vunpack.c.l.b16 %v1336
        %v1377 = vunpack.c.l.b16 %v1337
        %v1378 = vpack.c.b16 %v1363, %v1362
        %v1379 = vpack.c.b16 %v1365, %v1364
        %v1380 = vpack.c.b16 %v1367, %v1366
        %v1381 = vpack.c.b16 %v1369, %v1368
        %v1382 = vpack.c.b16 %v1371, %v1370
        %v1383 = vpack.c.b16 %v1373, %v1372
        %v1384 = vpack.c.b16 %v1375, %v1374
        %v1385 = vpack.c.b16 %v1377, %v1376
        %1394 = vmatprep.subr.bf16.mxu0 0
        %1395 = vmatpush1.bf16.msra.mxu0 %v1378
        %1396 = vmatprep.subr.bf16.mxu0 0
        %1397 = vmatpush1.bf16.msra.mxu0 %v1379
        %1398 = vmatprep.subr.bf16.mxu0 0
        %1399 = vmatpush1.bf16.msra.mxu0 %v1380
        %1400 = vmatprep.subr.bf16.mxu0 0
        %1401 = vmatpush1.bf16.msra.mxu0 %v1381
        %1402 = vmatprep.subr.bf16.mxu0 0
        %1403 = vmatpush1.bf16.msra.mxu0 %v1382
        %1404 = vmatprep.subr.bf16.mxu0 0
        %1405 = vmatpush1.bf16.msra.mxu0 %v1383
        %1406 = vmatprep.subr.bf16.mxu0 0
        %1407 = vmatpush1.bf16.msra.mxu0 %v1384
        %1408 = vmatprep.subr.bf16.mxu0 0
        %1409 = vmatpush1.bf16.msra.mxu0 %v1385
        %1410 = vmatprep.subr.bf16.mxu0 0
        %1411 = vmatpush1.bf16.msra.mxu0 0
        %1412 = vmatprep.subr.bf16.mxu0 0
        %1413 = vmatpush1.bf16.msra.mxu0 0
        %1414 = vmatprep.subr.bf16.mxu0 0
        %1415 = vmatpush1.bf16.msra.mxu0 0
        %1416 = vmatprep.subr.bf16.mxu0 0
        %1417 = vmatpush1.bf16.msra.mxu0 0
        %1418 = vmatprep.subr.bf16.mxu0 0
        %1419 = vmatpush1.bf16.msra.mxu0 0
        %1420 = vmatprep.subr.bf16.mxu0 0
        %1421 = vmatpush1.bf16.msra.mxu0 0
        %1422 = vmatprep.subr.bf16.mxu0 0
        %1423 = vmatpush1.bf16.msra.mxu0 0
        %1424 = vmatprep.subr.bf16.mxu0 0
        %1425 = vmatpush1.bf16.msra.mxu0 0
        %1426 = vmatprep.mubr.bf16.mxu0 0
        %1427 = vmatmul.mubr.bf16.gmra.mrb[0].mxu0 %v1317
        %v1428 = vpop.f32.mrb[0].mxu0
        %v1429 = vadd.f32 %v1344, %v1428
        %v1430 = vpop.f32.mrb[0].mxu0
        %v1431 = vpop.f32.mrb[0].mxu0
        %v1432 = vadd.f32 %v1344, %v1431
        %v1433 = vpop.f32.mrb[0].mxu0
        %1434 = vmatprep.mubr.bf16.mxu0 0
        %1435 = vmatmul.mubr.bf16.gmra.mrb[0].mxu0 %v1318
        %v1436 = vpop.f32.mrb[0].mxu0
        %v1437 = vadd.f32 %v1344, %v1436
        %v1438 = vpop.f32.mrb[0].mxu0
        %v1439 = vpop.f32.mrb[0].mxu0
        %v1440 = vadd.f32 %v1344, %v1439
        %v1441 = vpop.f32.mrb[0].mxu0
        %1442 = vmatprep.mubr.bf16.mxu0 0
        %1443 = vmatmul.mubr.bf16.gmra.mrb[0].mxu0 %v1319
        %v1444 = vpop.f32.mrb[0].mxu0
        %v1445 = vadd.f32 %v1344, %v1444
        %v1446 = vpop.f32.mrb[0].mxu0
        %v1447 = vpop.f32.mrb[0].mxu0
        %v1448 = vadd.f32 %v1344, %v1447
        %v1449 = vpop.f32.mrb[0].mxu0
        %1450 = vmatprep.mubr.bf16.mxu0 0
        %1451 = vmatmul.mubr.bf16.gmra.mrb[0].mxu0 %v1320
        %v1452 = vpop.f32.mrb[0].mxu0
        %v1453 = vadd.f32 %v1344, %v1452
        %v1454 = vpop.f32.mrb[0].mxu0
        %v1455 = vpop.f32.mrb[0].mxu0
        %v1456 = vadd.f32 %v1344, %v1455
        %v1457 = vpop.f32.mrb[0].mxu0
        %1458 = vdwg.mxu0
        %v1459 = vmax.f32 %v1429, 0.0
        %v1460 = vmax.f32 %v1432, 0.0
        %v1461 = vmax.f32 %v1437, 0.0
        %v1462 = vmax.f32 %v1440, 0.0
        %v1463 = vmax.f32 %v1445, 0.0
        %v1464 = vmax.f32 %v1448, 0.0
        %v1465 = vmax.f32 %v1453, 0.0
        %v1466 = vmax.f32 %v1456, 0.0
        %v1467 = vpack.c.bf16 %v1460, %v1459
        %v1468 = vpack.c.bf16 %v1462, %v1461
        %v1469 = vpack.c.bf16 %v1464, %v1463
        %v1470 = vpack.c.bf16 %v1466, %v1465
        %s1471 = scalar_lea.vmem [#allocation7], 256
        %v1472 = vld [vmem:[%s1471] sm:$0xf]
        %v1473 = vld [vmem:[%s1471 + $0x4] sm:$0xf]
        %v1474 = vld [vmem:[%s1471 + $0x8] sm:$0xf]
        %v1475 = vld [vmem:[%s1471 + $0xc] sm:$0xf]
        %v1476 = vld [vmem:[%s1471 + $0x10] sm:$0xf]
        %v1477 = vld [vmem:[%s1471 + $0x14] sm:$0xf]
        %v1478 = vld [vmem:[%s1471 + $0x18] sm:$0xf]
        %v1479 = vld [vmem:[%s1471 + $0x1c] sm:$0xf]
        %v1480 = vld [vmem:[%s1471 + $0x20] sm:$0xf]
        %v1481 = vld [vmem:[%s1471 + $0x24] sm:$0xf]
        %v1482 = vld [vmem:[%s1471 + $0x28] sm:$0xf]
        %v1483 = vld [vmem:[%s1471 + $0x2c] sm:$0xf]
        %v1484 = vld [vmem:[%s1471 + $0x30] sm:$0xf]
        %v1485 = vld [vmem:[%s1471 + $0x34] sm:$0xf]
        %v1486 = vld [vmem:[%s1471 + $0x38] sm:$0xf]
        %v1487 = vld [vmem:[%s1471 + $0x3c] sm:$0xf]
        %s1488 = scalar_lea.vmem %s3, 4
        %v1489 = vld [vmem:[%s1488] sm:$0x1]
        %v1491 = vlaneseq
        %v1492 = vshrl.u32 %v1491, 7
        %v1493 = vsub.s32 0, %v1492
        %v1494 = vrot.slane %v1489, %v1493
        %v1512 = vunpack.c.l.b16 %v1472
        %v1513 = vunpack.c.l.b16 %v1473
        %v1514 = vunpack.c.l.b16 %v1474
        %v1515 = vunpack.c.l.b16 %v1475
        %v1516 = vunpack.c.l.b16 %v1476
        %v1517 = vunpack.c.l.b16 %v1477
        %v1518 = vunpack.c.l.b16 %v1478
        %v1519 = vunpack.c.l.b16 %v1479
        %v1520 = vunpack.c.l.b16 %v1480
        %v1521 = vunpack.c.l.b16 %v1481
        %v1522 = vunpack.c.l.b16 %v1482
        %v1523 = vunpack.c.l.b16 %v1483
        %v1524 = vunpack.c.l.b16 %v1484
        %v1525 = vunpack.c.l.b16 %v1485
        %v1526 = vunpack.c.l.b16 %v1486
        %v1527 = vunpack.c.l.b16 %v1487
        %v1528 = vpack.c.b16 %v1513, %v1512
        %v1529 = vpack.c.b16 %v1515, %v1514
        %v1530 = vpack.c.b16 %v1517, %v1516
        %v1531 = vpack.c.b16 %v1519, %v1518
        %v1532 = vpack.c.b16 %v1521, %v1520
        %v1533 = vpack.c.b16 %v1523, %v1522
        %v1534 = vpack.c.b16 %v1525, %v1524
        %v1535 = vpack.c.b16 %v1527, %v1526
        %1544 = vmatprep.subr.bf16.mxu0 0
        %1545 = vmatpush1.bf16.msra.mxu0 %v1528
        %1546 = vmatprep.subr.bf16.mxu0 0
        %1547 = vmatpush1.bf16.msra.mxu0 %v1529
        %1548 = vmatprep.subr.bf16.mxu0 0
        %1549 = vmatpush1.bf16.msra.mxu0 %v1530
        %1550 = vmatprep.subr.bf16.mxu0 0
        %1551 = vmatpush1.bf16.msra.mxu0 %v1531
        %1552 = vmatprep.subr.bf16.mxu0 0
        %1553 = vmatpush1.bf16.msra.mxu0 %v1532
        %1554 = vmatprep.subr.bf16.mxu0 0
        %1555 = vmatpush1.bf16.msra.mxu0 %v1533
        %1556 = vmatprep.subr.bf16.mxu0 0
        %1557 = vmatpush1.bf16.msra.mxu0 %v1534
        %1558 = vmatprep.subr.bf16.mxu0 0
        %1559 = vmatpush1.bf16.msra.mxu0 %v1535
        %1560 = vmatprep.subr.bf16.mxu0 0
        %1561 = vmatpush1.bf16.msra.mxu0 0
        %1562 = vmatprep.subr.bf16.mxu0 0
        %1563 = vmatpush1.bf16.msra.mxu0 0
        %1564 = vmatprep.subr.bf16.mxu0 0
        %1565 = vmatpush1.bf16.msra.mxu0 0
        %1566 = vmatprep.subr.bf16.mxu0 0
        %1567 = vmatpush1.bf16.msra.mxu0 0
        %1568 = vmatprep.subr.bf16.mxu0 0
        %1569 = vmatpush1.bf16.msra.mxu0 0
        %1570 = vmatprep.subr.bf16.mxu0 0
        %1571 = vmatpush1.bf16.msra.mxu0 0
        %1572 = vmatprep.subr.bf16.mxu0 0
        %1573 = vmatpush1.bf16.msra.mxu0 0
        %1574 = vmatprep.subr.bf16.mxu0 0
        %1575 = vmatpush1.bf16.msra.mxu0 0
        %1576 = vmatprep.mubr.bf16.mxu0 0
        %1577 = vmatmul.mubr.bf16.gmra.mrb[0].mxu0 %v1467
        %v1578 = vpop.f32.mrb[0].mxu0
        %v1579 = vadd.f32 %v1494, %v1578
        %v1580 = vpop.f32.mrb[0].mxu0
        %v1581 = vpop.f32.mrb[0].mxu0
        %v1582 = vadd.f32 %v1494, %v1581
        %v1583 = vpop.f32.mrb[0].mxu0
        %1584 = vmatprep.mubr.bf16.mxu0 0
        %1585 = vmatmul.mubr.bf16.gmra.mrb[0].mxu0 %v1468
        %v1586 = vpop.f32.mrb[0].mxu0
        %v1587 = vadd.f32 %v1494, %v1586
        %v1588 = vpop.f32.mrb[0].mxu0
        %v1589 = vpop.f32.mrb[0].mxu0
        %v1590 = vadd.f32 %v1494, %v1589
        %v1591 = vpop.f32.mrb[0].mxu0
        %1592 = vmatprep.mubr.bf16.mxu0 0
        %1593 = vmatmul.mubr.bf16.gmra.mrb[0].mxu0 %v1469
        %v1594 = vpop.f32.mrb[0].mxu0
        %v1595 = vadd.f32 %v1494, %v1594
        %v1596 = vpop.f32.mrb[0].mxu0
        %v1597 = vpop.f32.mrb[0].mxu0
        %v1598 = vadd.f32 %v1494, %v1597
        %v1599 = vpop.f32.mrb[0].mxu0
        %1600 = vmatprep.mubr.bf16.mxu0 0
        %1601 = vmatmul.mubr.bf16.gmra.mrb[0].mxu0 %v1470
        %v1602 = vpop.f32.mrb[0].mxu0
        %v1603 = vadd.f32 %v1494, %v1602
        %v1604 = vpop.f32.mrb[0].mxu0
        %v1605 = vpop.f32.mrb[0].mxu0
        %v1606 = vadd.f32 %v1494, %v1605
        %v1607 = vpop.f32.mrb[0].mxu0
        %1608 = vdwg.mxu0
        %v1609 = vmax.f32 %v1579, 0.0
        %v1610 = vmax.f32 %v1582, 0.0
        %v1611 = vmax.f32 %v1587, 0.0
        %v1612 = vmax.f32 %v1590, 0.0
        %v1613 = vmax.f32 %v1595, 0.0
        %v1614 = vmax.f32 %v1598, 0.0
        %v1615 = vmax.f32 %v1603, 0.0
        %v1616 = vmax.f32 %v1606, 0.0
        %v1617 = vpack.c.bf16 %v1610, %v1609
        %v1618 = vpack.c.bf16 %v1612, %v1611
        %v1619 = vpack.c.bf16 %v1614, %v1613
        %v1620 = vpack.c.bf16 %v1616, %v1615
        %s1621 = scalar_lea.vmem [#allocation7], 320
        %v1622 = vld [vmem:[%s1621] sm:$0xf]
        %v1623 = vld [vmem:[%s1621 + $0x4] sm:$0xf]
        %v1624 = vld [vmem:[%s1621 + $0x8] sm:$0xf]
        %v1625 = vld [vmem:[%s1621 + $0xc] sm:$0xf]
        %v1626 = vld [vmem:[%s1621 + $0x10] sm:$0xf]
        %v1627 = vld [vmem:[%s1621 + $0x14] sm:$0xf]
        %v1628 = vld [vmem:[%s1621 + $0x18] sm:$0xf]
        %v1629 = vld [vmem:[%s1621 + $0x1c] sm:$0xf]
        %v1630 = vld [vmem:[%s1621 + $0x20] sm:$0xf]
        %v1631 = vld [vmem:[%s1621 + $0x24] sm:$0xf]
        %v1632 = vld [vmem:[%s1621 + $0x28] sm:$0xf]
        %v1633 = vld [vmem:[%s1621 + $0x2c] sm:$0xf]
        %v1634 = vld [vmem:[%s1621 + $0x30] sm:$0xf]
        %v1635 = vld [vmem:[%s1621 + $0x34] sm:$0xf]
        %v1636 = vld [vmem:[%s1621 + $0x38] sm:$0xf]
        %v1637 = vld [vmem:[%s1621 + $0x3c] sm:$0xf]
        %s1638 = scalar_lea.vmem %s3, 5
        %v1639 = vld [vmem:[%s1638] sm:$0x1]
        %v1641 = vlaneseq
        %v1642 = vshrl.u32 %v1641, 7
        %v1643 = vsub.s32 0, %v1642
        %v1644 = vrot.slane %v1639, %v1643
        %v1662 = vunpack.c.l.b16 %v1622
        %v1663 = vunpack.c.l.b16 %v1623
        %v1664 = vunpack.c.l.b16 %v1624
        %v1665 = vunpack.c.l.b16 %v1625
        %v1666 = vunpack.c.l.b16 %v1626
        %v1667 = vunpack.c.l.b16 %v1627
        %v1668 = vunpack.c.l.b16 %v1628
        %v1669 = vunpack.c.l.b16 %v1629
        %v1670 = vunpack.c.l.b16 %v1630
        %v1671 = vunpack.c.l.b16 %v1631
        %v1672 = vunpack.c.l.b16 %v1632
        %v1673 = vunpack.c.l.b16 %v1633
        %v1674 = vunpack.c.l.b16 %v1634
        %v1675 = vunpack.c.l.b16 %v1635
        %v1676 = vunpack.c.l.b16 %v1636
        %v1677 = vunpack.c.l.b16 %v1637
        %v1678 = vpack.c.b16 %v1663, %v1662
        %v1679 = vpack.c.b16 %v1665, %v1664
        %v1680 = vpack.c.b16 %v1667, %v1666
        %v1681 = vpack.c.b16 %v1669, %v1668
        %v1682 = vpack.c.b16 %v1671, %v1670
        %v1683 = vpack.c.b16 %v1673, %v1672
        %v1684 = vpack.c.b16 %v1675, %v1674
        %v1685 = vpack.c.b16 %v1677, %v1676
        %1694 = vmatprep.subr.bf16.mxu0 0
        %1695 = vmatpush1.bf16.msra.mxu0 %v1678
        %1696 = vmatprep.subr.bf16.mxu0 0
        %1697 = vmatpush1.bf16.msra.mxu0 %v1679
        %1698 = vmatprep.subr.bf16.mxu0 0
        %1699 = vmatpush1.bf16.msra.mxu0 %v1680
        %1700 = vmatprep.subr.bf16.mxu0 0
        %1701 = vmatpush1.bf16.msra.mxu0 %v1681
        %1702 = vmatprep.subr.bf16.mxu0 0
        %1703 = vmatpush1.bf16.msra.mxu0 %v1682
        %1704 = vmatprep.subr.bf16.mxu0 0
        %1705 = vmatpush1.bf16.msra.mxu0 %v1683
        %1706 = vmatprep.subr.bf16.mxu0 0
        %1707 = vmatpush1.bf16.msra.mxu0 %v1684
        %1708 = vmatprep.subr.bf16.mxu0 0
        %1709 = vmatpush1.bf16.msra.mxu0 %v1685
        %1710 = vmatprep.subr.bf16.mxu0 0
        %1711 = vmatpush1.bf16.msra.mxu0 0
        %1712 = vmatprep.subr.bf16.mxu0 0
        %1713 = vmatpush1.bf16.msra.mxu0 0
        %1714 = vmatprep.subr.bf16.mxu0 0
        %1715 = vmatpush1.bf16.msra.mxu0 0
        %1716 = vmatprep.subr.bf16.mxu0 0
        %1717 = vmatpush1.bf16.msra.mxu0 0
        %1718 = vmatprep.subr.bf16.mxu0 0
        %1719 = vmatpush1.bf16.msra.mxu0 0
        %1720 = vmatprep.subr.bf16.mxu0 0
        %1721 = vmatpush1.bf16.msra.mxu0 0
        %1722 = vmatprep.subr.bf16.mxu0 0
        %1723 = vmatpush1.bf16.msra.mxu0 0
        %1724 = vmatprep.subr.bf16.mxu0 0
        %1725 = vmatpush1.bf16.msra.mxu0 0
        %1726 = vmatprep.mubr.bf16.mxu0 0
        %1727 = vmatmul.mubr.bf16.gmra.mrb[0].mxu0 %v1617
        %v1728 = vpop.f32.mrb[0].mxu0
        %v1729 = vadd.f32 %v1644, %v1728
        %v1730 = vpop.f32.mrb[0].mxu0
        %v1731 = vpop.f32.mrb[0].mxu0
        %v1732 = vadd.f32 %v1644, %v1731
        %v1733 = vpop.f32.mrb[0].mxu0
        %1734 = vmatprep.mubr.bf16.mxu0 0
        %1735 = vmatmul.mubr.bf16.gmra.mrb[0].mxu0 %v1618
        %v1736 = vpop.f32.mrb[0].mxu0
        %v1737 = vadd.f32 %v1644, %v1736
        %v1738 = vpop.f32.mrb[0].mxu0
        %v1739 = vpop.f32.mrb[0].mxu0
        %v1740 = vadd.f32 %v1644, %v1739
        %v1741 = vpop.f32.mrb[0].mxu0
        %1742 = vmatprep.mubr.bf16.mxu0 0
        %1743 = vmatmul.mubr.bf16.gmra.mrb[0].mxu0 %v1619
        %v1744 = vpop.f32.mrb[0].mxu0
        %v1745 = vadd.f32 %v1644, %v1744
        %v1746 = vpop.f32.mrb[0].mxu0
        %v1747 = vpop.f32.mrb[0].mxu0
        %v1748 = vadd.f32 %v1644, %v1747
        %v1749 = vpop.f32.mrb[0].mxu0
        %1750 = vmatprep.mubr.bf16.mxu0 0
        %1751 = vmatmul.mubr.bf16.gmra.mrb[0].mxu0 %v1620
        %v1752 = vpop.f32.mrb[0].mxu0
        %v1753 = vadd.f32 %v1644, %v1752
        %v1754 = vpop.f32.mrb[0].mxu0
        %v1755 = vpop.f32.mrb[0].mxu0
        %v1756 = vadd.f32 %v1644, %v1755
        %v1757 = vpop.f32.mrb[0].mxu0
        %1758 = vdwg.mxu0
        %1759 = vst [vmem:[%s271] sm:$0xff] %v1729
        %1760 = vst [vmem:[%s271 + $0x8] sm:$0xff] %v1732
        %1761 = vst [vmem:[%s271 + $0x10] sm:$0xff] %v1737
        %1762 = vst [vmem:[%s271 + $0x18] sm:$0xff] %v1740
        %1763 = vst [vmem:[%s271 + $0x20] sm:$0xff] %v1745
        %1764 = vst [vmem:[%s271 + $0x28] sm:$0xff] %v1748
        %1765 = vst [vmem:[%s271 + $0x30] sm:$0xff] %v1753
        %1766 = vst [vmem:[%s271 + $0x38] sm:$0xff] %v1756
        %s1767 = sand.u32 %s126, 1
        %s1768 = scalar_lea.sflag [#allocation4], %s1767
        %s1769 = sand.u32 %s126, 1
        %s1770 = smul.addr %s1769, 64
        %s1771 = scalar_lea.vmem [#allocation8], %s1770
        // Predicated region
        $region49: #{tpu_custom_call.1} parent=35 // pred_check
          %p1772 = pneg %p136
        $region50: #{tpu_custom_call.1} parent=35 // pred_check_branch
          %1774 = sbr.rel (%p1772) target = $region52
        $region51: #{tpu_custom_call.1} parent=35 // pred_region
          %s1775 = smul.u32 4, %s24
          %s1777 = ssub.s32 1024, 1024
          %1778 = vsyncadd %s1768, %s1777
          %s1779 = smul.addr %s1775, 2
          %s1780 = smul.addr %s1779, 128
          %s1781 = scalar_lea.hbm %s4, %s1780
          %s1782 = sshll.u32 %s1771, 4
          %s1783 = int_to_ptr.vmem [resolvable:$true] %s1782
          %1788 = dma.vmem_to_hbm [thread:$0]  %s1783, 1024, %s1781, %s1768, 128, 128, 8
        $region52: #{tpu_custom_call.1} parent=35 // pred_fallthru
          _
      $region36: #{tpu_custom_call.1} parent=5 // pred_fallthru
        _
      %p1789 = scmp.le.s32.totalorder 2, %s19
      // Predicated region
      $region53: #{tpu_custom_call.1} parent=5 // pred_check
        %p1790 = pneg %p1789
      $region54: #{tpu_custom_call.1} parent=5 // pred_check_branch
        %1792 = sbr.rel (%p1790) target = $region56
      $region55: #{tpu_custom_call.1} parent=5 // pred_region
        %s1793 = ssub.s32 %s19, 2
        // Predicated region
        $region57: #{tpu_custom_call.1} parent=55 // pred_check
          %p1794 = pneg %p142
        $region58: #{tpu_custom_call.1} parent=55 // pred_check_branch
          %1796 = sbr.rel (%p1794) target = $region60
        $region59: #{tpu_custom_call.1} parent=55 // pred_region
          %s1797 = sand.u32 %s127, 1
          %s1798 = scalar_lea.sflag [#allocation4], %s1797
          %s1799 = sand.u32 %s127, 1
          %s1800 = smul.addr %s1799, 64
          %s1801 = scalar_lea.vmem [#allocation8], %s1800
          %1802 = dma.done %s1798, 1024
        $region60: #{tpu_custom_call.1} parent=55 // pred_fallthru
          _
      $region56: #{tpu_custom_call.1} parent=5 // pred_fallthru
        _
    $region6: #{tpu_custom_call.1} parent=1 // loop_footer
      %s23 = sadd.s32 1, %s19
    $region7: #{tpu_custom_call.1} parent=1 // loop_footer_branch
      %18 = sbr.rel target = $region3
    $region8: #{tpu_custom_call.1} parent=1 // loop_exit
      _
    %1803 = vsyncpa [#allocation3], 1
    %s1804 = scalar_lea.sflag [#allocation3], 1
    %1805 = vsyncpa %s1804, 1
    %1806 = vsyncpa [#allocation6], 1
    %s1807 = scalar_lea.sflag [#allocation6], 1
    %1808 = vsyncpa %s1807, 1
    %1809 = vsyncpa [#allocation4], 1
    %s1810 = scalar_lea.sflag [#allocation4], 1
    %1811 = vsyncpa %s1810, 1

</llo_original>
